<compile_context>
chip_gen: v7x
topology: tpu7x:2x2x1
jax: 0.10.0
libtpu: 0.0.40
codegen_flags: <defaults>
</compile_context>

<pallas_src>
import functools
import math

import jax
import jax.numpy as jnp
from jax.experimental import pallas as pl
from jax.experimental.pallas import tpu as pltpu


def _round_up(x, m):
    return ((x + m - 1) // m) * m


@functools.lru_cache(maxsize=1)
def _vmem_budget_bytes():
    """~80% of physical per-core VMEM (v7x: ~51 MiB, v5e/v6e: ~102 MiB)."""
    phys = 128 << 20
    try:
        info = pltpu.get_tpu_info()
        phys = int(getattr(info, "vmem_capacity_bytes", phys))
    except Exception:
        pass
    return int(phys * 0.8)


# --------------------------------------------------------------------------
# Kernels
# --------------------------------------------------------------------------
def _proj_kernel(x_ref, w_ref, o_ref, acc_ref):
    """o[rows] = x[rows] @ W, K-tiled along the input-feature axis."""
    k = pl.program_id(1)

    @pl.when(k == 0)
    def _():
        acc_ref[...] = jnp.zeros_like(acc_ref)

    acc_ref[...] += jnp.dot(x_ref[...], w_ref[...],
                            preferred_element_type=jnp.float32)

    @pl.when(k == pl.num_programs(1) - 1)
    def _():
        o_ref[...] = acc_ref[...].astype(o_ref.dtype)


def _layer1_kernel(adj_ref, xw1_ref, b1_ref, w2_ref, hw2_ref, acc_ref):
    """hw2[rows] = relu(adj[rows, :] @ xw1 + b1) @ W2, K-tiled on node axis."""
    k = pl.program_id(1)

    @pl.when(k == 0)
    def _():
        acc_ref[...] = jnp.zeros_like(acc_ref)

    acc_ref[...] += jnp.dot(adj_ref[...], xw1_ref[...],
                            preferred_element_type=jnp.float32)

    @pl.when(k == pl.num_programs(1) - 1)
    def _():
        h = jnp.maximum(acc_ref[...] + b1_ref[...], 0.0)
        # TODO(synk): nn.Dropout is identity at inference; training-mode
        # stochastic dropout (pltpu.prng_*) intentionally omitted.
        hw2_ref[...] = jnp.dot(h.astype(w2_ref.dtype), w2_ref[...],
                               preferred_element_type=jnp.float32
                               ).astype(hw2_ref.dtype)


def _layer2_kernel(adj_ref, hw2_ref, b2_ref, o_ref, acc_ref):
    """out[rows] = adj[rows, :] @ hw2 + b2, K-tiled along the node axis."""
    k = pl.program_id(1)

    @pl.when(k == 0)
    def _():
        acc_ref[...] = jnp.zeros_like(acc_ref)

    acc_ref[...] += jnp.dot(adj_ref[...], hw2_ref[...],
                            preferred_element_type=jnp.float32)

    @pl.when(k == pl.num_programs(1) - 1)
    def _():
        o_ref[...] = (acc_ref[...] + b2_ref[...]).astype(o_ref.dtype)


# --------------------------------------------------------------------------
# Wrapper
# --------------------------------------------------------------------------
@functools.partial(jax.jit, static_argnames=("compute_dtype",))
def gcn_forward(x, adj, w1, b1, w2, b2, *, compute_dtype=jnp.bfloat16):
    """GCN forward:  adj @ (relu(adj @ (x @ W1) + b1) @ W2) + b2."""
    n, nfeat = x.shape
    nhid = w1.shape[1]
    nclass = w2.shape[1]

    # Lane-dense padding (multiples of 128).  Zero padding is exact: padded
    # adj rows/cols are zero, so any relu(b1) garbage produced for padded node
    # rows is multiplied by zero adjacency columns in layer 2 and the real
    # output rows/cols (sliced at the end) are unaffected.
    n_pad = _round_up(n, 128)
    f_pad = _round_up(nfeat, 128)
    h_pad = _round_up(nhid, 128)
    c_pad = _round_up(nclass, 128)

    cdt = jnp.dtype(compute_dtype)
    isz = cdt.itemsize
    budget = _vmem_budget_bytes()

    # ---- tile selection (shape-static, checked against the VMEM budget) ----
    def est_proj(tm, tk):
        return (2 * tm * tk * isz            # x tiles (double buffered)
                + 2 * tk * h_pad * isz       # W1 K-tiles (double buffered)
                + 2 * tm * h_pad * isz       # xw1 out tiles (double buffered)
                + tm * h_pad * 4             # f32 accumulator
                + (1 << 20))

    def est_agg(tm, tk):
        w = max(h_pad, c_pad)
        return (2 * tm * tk * isz            # adj tiles (double buffered)
                + 2 * tk * w * isz           # xw1 / hw2 K-tiles (double buffered)
                + 2 * h_pad * c_pad * isz    # W2 (conservatively x2)
                + 2 * tm * w * 4             # out tiles (f32 worst case)
                + 2 * tm * w * 4             # f32 accumulator + temporaries
                + (2 << 20))

    def pick(row_total, k_total, est_fn):
        for tm in (256, 128):
            if row_total % tm:
                continue
            for tk in (4096, 2048, 1024, 512, 256, 128):
                if k_total % tk:
                    continue
                if est_fn(tm, tk) <= budget:
                    return tm, tk
        return 128, 128

    def vlimit(est):
        return int(min(max(4 * est, 32 << 20), budget))

    # ---- pad operands -------------------------------------------------------
    def pad2(a, shape, dtype):
        return jnp.zeros(shape, dtype).at[:a.shape[0], :a.shape[1]].set(
            a.astype(dtype))

    adj_p = pad2(adj, (n_pad, n_pad), cdt)
    x_p = pad2(x, (n_pad, f_pad), cdt)
    w1_p = pad2(w1, (f_pad, h_pad), cdt)
    w2_p = pad2(w2, (h_pad, c_pad), cdt)
    b1_p = jnp.zeros((1, h_pad), jnp.float32).at[0, :nhid].set(
        b1.astype(jnp.float32))
    b2_p = jnp.zeros((1, c_pad), jnp.float32).at[0, :nclass].set(
        b2.astype(jnp.float32))

    # ---- call 0: xw1 = x @ W1  (narrow (n_pad, h_pad) result) ---------------
    # Note: with both padded dims >= 128 and typical GCN shapes f_pad >= h_pad,
    # projecting first is never worse than contracting adj against raw x.
    tm0, tk0 = pick(n_pad, f_pad, est_proj)
    xw1 = pl.pallas_call(
        _proj_kernel,
        out_shape=jax.ShapeDtypeStruct((n_pad, h_pad), cdt),
        grid_spec=pltpu.PrefetchScalarGridSpec(
            num_scalar_prefetch=0,
            grid=(n_pad // tm0, f_pad // tk0),
            in_specs=[
                pl.BlockSpec((tm0, tk0), lambda i, k: (i, k)),      # x rows
                pl.BlockSpec((tk0, h_pad), lambda i, k: (k, 0)),    # W1 K-tile
            ],
            out_specs=pl.BlockSpec((tm0, h_pad), lambda i, k: (i, 0)),
            scratch_shapes=[pltpu.VMEM((tm0, h_pad), jnp.float32)],
        ),
        compiler_params=pltpu.CompilerParams(
            dimension_semantics=("parallel", "arbitrary"),
            vmem_limit_bytes=vlimit(est_proj(tm0, tk0)),
        ),
    )(x_p, w1_p)

    # ---- call 1: hw2 = relu(adj @ xw1 + b1) @ W2 -----------------------------
    tm1, tk1 = pick(n_pad, n_pad, est_agg)
    hw2 = pl.pallas_call(
        _layer1_kernel,
        out_shape=jax.ShapeDtypeStruct((n_pad, c_pad), cdt),
        grid_spec=pltpu.PrefetchScalarGridSpec(
            num_scalar_prefetch=0,
            grid=(n_pad // tm1, n_pad // tk1),
            in_specs=[
                pl.BlockSpec((tm1, tk1), lambda i, k: (i, k)),      # adj rows
                pl.BlockSpec((tk1, h_pad), lambda i, k: (k, 0)),    # xw1 K-tile
                pl.BlockSpec((1, h_pad), lambda i, k: (0, 0)),      # b1
                pl.BlockSpec((h_pad, c_pad), lambda i, k: (0, 0)),  # W2
            ],
            out_specs=pl.BlockSpec((tm1, c_pad), lambda i, k: (i, 0)),
            scratch_shapes=[pltpu.VMEM((tm1, h_pad), jnp.float32)],
        ),
        compiler_params=pltpu.CompilerParams(
            dimension_semantics=("parallel", "arbitrary"),
            vmem_limit_bytes=vlimit(est_agg(tm1, tk1)),
        ),
    )(adj_p, xw1, b1_p, w2_p)

    # ---- call 2: out = adj @ hw2 + b2 ----------------------------------------
    out_p = pl.pallas_call(
        _layer2_kernel,
        out_shape=jax.ShapeDtypeStruct((n_pad, c_pad), jnp.float32),
        grid_spec=pltpu.PrefetchScalarGridSpec(
            num_scalar_prefetch=0,
            grid=(n_pad // tm1, n_pad // tk1),
            in_specs=[
                pl.BlockSpec((tm1, tk1), lambda i, k: (i, k)),      # adj rows
                pl.BlockSpec((tk1, c_pad), lambda i, k: (k, 0)),    # hw2 K-tile
                pl.BlockSpec((1, c_pad), lambda i, k: (0, 0)),      # b2
            ],
            out_specs=pl.BlockSpec((tm1, c_pad), lambda i, k: (i, 0)),
            scratch_shapes=[pltpu.VMEM((tm1, c_pad), jnp.float32)],
        ),
        compiler_params=pltpu.CompilerParams(
            dimension_semantics=("parallel", "arbitrary"),
            vmem_limit_bytes=vlimit(est_agg(tm1, tk1)),
        ),
    )(adj_p, hw2, b2_p)

    return out_p[:n, :nclass]


def init_gcn_params(nfeat, nhid, nclass, key):
    """Deterministic init mirroring GCN.reset_parameters (uniform(-stdv, stdv))."""
    k1, k2, k3, k4 = jax.random.split(key, 4)
    stdv_in_hid = math.sqrt(6) / math.sqrt(nfeat + nhid)
    stdv_hid_out = math.sqrt(6) / math.sqrt(nhid + nclass)
    w1 = jax.random.uniform(k1, (nfeat, nhid), jnp.float32,
                            minval=-stdv_in_hid, maxval=stdv_in_hid)
    b1 = jax.random.uniform(k2, (nhid,), jnp.float32,
                            minval=-stdv_in_hid, maxval=stdv_in_hid)
    w2 = jax.random.uniform(k3, (nhid, nclass), jnp.float32,
                            minval=-stdv_hid_out, maxval=stdv_hid_out)
    b2 = jax.random.uniform(k4, (nclass,), jnp.float32,
                            minval=-stdv_hid_out, maxval=stdv_hid_out)
    return w1, b1, w2, b2


if __name__ == "__main__":
    nfeat, nhid, nclass = 8, 32, 8
    num_nodes = 16
    dropout = 0.5  # unused at inference

    key = jax.random.PRNGKey(0)
    kx, ka, kp = jax.random.split(key, 3)

    # node features [N, nfeat]
    x = jax.random.normal(kx, (num_nodes, nfeat), jnp.float32)

    # symmetric normalized dense adjacency with self-loops: D^-1/2 (A+I) D^-1/2
    a_raw = (jax.random.uniform(ka, (num_nodes, num_nodes)) > 0.7).astype(jnp.float32)
    a_sym = jnp.maximum(a_raw, a_raw.T) + jnp.eye(num_nodes, dtype=jnp.float32)
    deg = jnp.sum(a_sym, axis=1)
    d_inv_sqrt = 1.0 / jnp.sqrt(deg)
    adj = a_sym * d_inv_sqrt[:, None] * d_inv_sqrt[None, :]

    w1, b1, w2, b2 = init_gcn_params(nfeat, nhid, nclass, kp)

    # plain-JAX reference (same association as the PyTorch module)
    h_ref = jnp.maximum(adj @ (x @ w1) + b1, 0.0)
    out_ref = adj @ (h_ref @ w2) + b2

    # f32 path (numerically faithful to the PyTorch module's dtype)
    out_f32 = gcn_forward(x, adj, w1, b1, w2, b2, compute_dtype=jnp.float32)
    jax.block_until_ready(out_f32)
    assert out_f32.shape == (num_nodes, nclass)
    assert jnp.allclose(out_f32, out_ref, atol=2e-3, rtol=2e-3), (
        float(jnp.max(jnp.abs(out_f32 - out_ref))))

    # default bf16 streaming path (halves adj HBM traffic; f32 MXU accumulation,
    # f32 biases and f32 final output)
    out_bf16 = gcn_forward(x, adj, w1, b1, w2, b2)
    jax.block_until_ready(out_bf16)
    assert out_bf16.shape == (num_nodes, nclass)
    assert jnp.allclose(out_bf16, out_ref, atol=5e-2, rtol=5e-2), (
        float(jnp.max(jnp.abs(out_bf16 - out_ref))))

    print("KERNEL_OK")
</pallas_src>

<mosaic_0001>
module attributes {stable_mosaic.version = 11 : i64} {
  func.func @_proj_kernel(%arg0: i32, %arg1: i32, %arg2: memref<128x128xf32, #tpu.memory_space<vmem>>, %arg3: memref<128x128xf32, #tpu.memory_space<vmem>>, %arg4: memref<128x128xf32, #tpu.memory_space<vmem>>, %arg5: memref<128x128xf32, #tpu.memory_space<vmem>>) attributes {dimension_semantics = [#tpu.dimension_semantics<parallel>, #tpu.dimension_semantics<arbitrary>], iteration_bounds = array<i64: 1, 1>, scalar_prefetch = 0 : i64, scratch_operands = 1 : i64, tpu.core_type = #tpu.core_type<tc>, window_params = [{transform_indices = @transform_0, window_bounds = array<i64: 128, 128>}, {transform_indices = @transform_1, window_bounds = array<i64: 128, 128>}, {transform_indices = @transform_2, window_bounds = array<i64: 128, 128>}]} {
    %c0_i32 = arith.constant 0 : i32
    %0 = arith.cmpi eq, %arg1, %c0_i32 : i32
    %1 = arith.extui %0 : i1 to i32
    %c0_i32_0 = arith.constant 0 : i32
    %2 = arith.cmpi ne, %1, %c0_i32_0 : i32
    scf.if %2 {
      %cst_10 = arith.constant 0.000000e+00 : f32
      %12 = vector.broadcast %cst_10 : f32 to vector<128x128xf32>
      %c0_11 = arith.constant 0 : index
      %c0_12 = arith.constant 0 : index
      %13 = vector.load %arg5[%c0_11, %c0_12] : memref<128x128xf32, #tpu.memory_space<vmem>>, vector<128x128xf32>
      tpu.vector_store %arg5[%c0_11, %c0_12], %12 {strides = array<i32>} : memref<128x128xf32, #tpu.memory_space<vmem>>, vector<128x128xf32>,
    } else {
    }
    %c0 = arith.constant 0 : index
    %c0_1 = arith.constant 0 : index
    %3 = vector.load %arg5[%c0, %c0_1] : memref<128x128xf32, #tpu.memory_space<vmem>>, vector<128x128xf32>
    %c0_2 = arith.constant 0 : index
    %c0_3 = arith.constant 0 : index
    %4 = vector.load %arg2[%c0_2, %c0_3] : memref<128x128xf32, #tpu.memory_space<vmem>>, vector<128x128xf32>
    %c0_4 = arith.constant 0 : index
    %c0_5 = arith.constant 0 : index
    %5 = vector.load %arg3[%c0_4, %c0_5] : memref<128x128xf32, #tpu.memory_space<vmem>>, vector<128x128xf32>
    %cst = arith.constant dense<0.000000e+00> : vector<128x128xf32>
    %6 = tpu.matmul %4, %5, %cst {dimension_numbers = #tpu.dot_dimension_numbers<[1], [0], [0], [1], [0, 0, 1, 1], [], []>} : vector<128x128xf32>, vector<128x128xf32>, vector<128x128xf32> -> vector<128x128xf32>
    %7 = arith.addf %3, %6 : vector<128x128xf32>
    %c0_6 = arith.constant 0 : index
    %c0_7 = arith.constant 0 : index
    %8 = vector.load %arg5[%c0_6, %c0_7] : memref<128x128xf32, #tpu.memory_space<vmem>>, vector<128x128xf32>
    tpu.vector_store %arg5[%c0_6, %c0_7], %7 {strides = array<i32>} : memref<128x128xf32, #tpu.memory_space<vmem>>, vector<128x128xf32>,
    %c0_i32_8 = arith.constant 0 : i32
    %9 = arith.cmpi eq, %arg1, %c0_i32_8 : i32
    %10 = arith.extui %9 : i1 to i32
    %c0_i32_9 = arith.constant 0 : i32
    %11 = arith.cmpi ne, %10, %c0_i32_9 : i32
    scf.if %11 {
      %c0_10 = arith.constant 0 : index
      %c0_11 = arith.constant 0 : index
      %12 = vector.load %arg5[%c0_10, %c0_11] : memref<128x128xf32, #tpu.memory_space<vmem>>, vector<128x128xf32>
      %c0_12 = arith.constant 0 : index
      %c0_13 = arith.constant 0 : index
      %13 = vector.load %arg4[%c0_12, %c0_13] : memref<128x128xf32, #tpu.memory_space<vmem>>, vector<128x128xf32>
      tpu.vector_store %arg4[%c0_12, %c0_13], %12 {strides = array<i32>} : memref<128x128xf32, #tpu.memory_space<vmem>>, vector<128x128xf32>,
    } else {
    }
    return
  }
  func.func @transform_0(%arg0: i32, %arg1: i32) -> (i32, i32) {
    %c0_i32 = arith.constant 0 : i32
    return %arg0, %arg1 : i32, i32
  }
  func.func @transform_1(%arg0: i32, %arg1: i32) -> (i32, i32) {
    %c0_i32 = arith.constant 0 : i32
    %c0_i32_0 = arith.constant 0 : i32
    return %arg1, %c0_i32 : i32, i32
  }
  func.func @transform_2(%arg0: i32, %arg1: i32) -> (i32, i32) {
    %c0_i32 = arith.constant 0 : i32
    %c0_i32_0 = arith.constant 0 : i32
    return %arg0, %c0_i32 : i32, i32
  }
}

module attributes {stable_mosaic.version = 11 : i64} {
  func.func @_layer1_kernel(%arg0: i32, %arg1: i32, %arg2: memref<128x128xf32, #tpu.memory_space<vmem>>, %arg3: memref<128x128xf32, #tpu.memory_space<vmem>>, %arg4: memref<1x128xf32, #tpu.memory_space<vmem>>, %arg5: memref<128x128xf32, #tpu.memory_space<vmem>>, %arg6: memref<128x128xf32, #tpu.memory_space<vmem>>, %arg7: memref<128x128xf32, #tpu.memory_space<vmem>>) attributes {dimension_semantics = [#tpu.dimension_semantics<parallel>, #tpu.dimension_semantics<arbitrary>], iteration_bounds = array<i64: 1, 1>, scalar_prefetch = 0 : i64, scratch_operands = 1 : i64, tpu.core_type = #tpu.core_type<tc>, window_params = [{transform_indices = @transform_0, window_bounds = array<i64: 128, 128>}, {transform_indices = @transform_1, window_bounds = array<i64: 128, 128>}, {pipeline_mode = #tpu.pipeline_mode<synchronous>, transform_indices = @transform_2, window_bounds = array<i64: 1, 128>}, {pipeline_mode = #tpu.pipeline_mode<synchronous>, transform_indices = @transform_3, window_bounds = array<i64: 128, 128>}, {transform_indices = @transform_4, window_bounds = array<i64: 128, 128>}]} {
    %c0_i32 = arith.constant 0 : i32
    %0 = arith.cmpi eq, %arg1, %c0_i32 : i32
    %1 = arith.extui %0 : i1 to i32
    %c0_i32_0 = arith.constant 0 : i32
    %2 = arith.cmpi ne, %1, %c0_i32_0 : i32
    scf.if %2 {
      %cst_10 = arith.constant 0.000000e+00 : f32
      %12 = vector.broadcast %cst_10 : f32 to vector<128x128xf32>
      %c0_11 = arith.constant 0 : index
      %c0_12 = arith.constant 0 : index
      %13 = vector.load %arg7[%c0_11, %c0_12] : memref<128x128xf32, #tpu.memory_space<vmem>>, vector<128x128xf32>
      tpu.vector_store %arg7[%c0_11, %c0_12], %12 {strides = array<i32>} : memref<128x128xf32, #tpu.memory_space<vmem>>, vector<128x128xf32>,
    } else {
    }
    %c0 = arith.constant 0 : index
    %c0_1 = arith.constant 0 : index
    %3 = vector.load %arg7[%c0, %c0_1] : memref<128x128xf32, #tpu.memory_space<vmem>>, vector<128x128xf32>
    %c0_2 = arith.constant 0 : index
    %c0_3 = arith.constant 0 : index
    %4 = vector.load %arg2[%c0_2, %c0_3] : memref<128x128xf32, #tpu.memory_space<vmem>>, vector<128x128xf32>
    %c0_4 = arith.constant 0 : index
    %c0_5 = arith.constant 0 : index
    %5 = vector.load %arg3[%c0_4, %c0_5] : memref<128x128xf32, #tpu.memory_space<vmem>>, vector<128x128xf32>
    %cst = arith.constant dense<0.000000e+00> : vector<128x128xf32>
    %6 = tpu.matmul %4, %5, %cst {dimension_numbers = #tpu.dot_dimension_numbers<[1], [0], [0], [1], [0, 0, 1, 1], [], []>} : vector<128x128xf32>, vector<128x128xf32>, vector<128x128xf32> -> vector<128x128xf32>
    %7 = arith.addf %3, %6 : vector<128x128xf32>
    %c0_6 = arith.constant 0 : index
    %c0_7 = arith.constant 0 : index
    %8 = vector.load %arg7[%c0_6, %c0_7] : memref<128x128xf32, #tpu.memory_space<vmem>>, vector<128x128xf32>
    tpu.vector_store %arg7[%c0_6, %c0_7], %7 {strides = array<i32>} : memref<128x128xf32, #tpu.memory_space<vmem>>, vector<128x128xf32>,
    %c0_i32_8 = arith.constant 0 : i32
    %9 = arith.cmpi eq, %arg1, %c0_i32_8 : i32
    %10 = arith.extui %9 : i1 to i32
    %c0_i32_9 = arith.constant 0 : i32
    %11 = arith.cmpi ne, %10, %c0_i32_9 : i32
    scf.if %11 {
      %c0_10 = arith.constant 0 : index
      %c0_11 = arith.constant 0 : index
      %12 = vector.load %arg7[%c0_10, %c0_11] : memref<128x128xf32, #tpu.memory_space<vmem>>, vector<128x128xf32>
      %c0_12 = arith.constant 0 : index
      %c0_13 = arith.constant 0 : index
      %13 = vector.load %arg4[%c0_12, %c0_13] : memref<1x128xf32, #tpu.memory_space<vmem>>, vector<1x128xf32>
      %14 = vector.broadcast %13 : vector<1x128xf32> to vector<128x128xf32>
      %15 = arith.addf %12, %14 : vector<128x128xf32>
      %cst_14 = arith.constant 0.000000e+00 : f32
      %16 = vector.broadcast %cst_14 : f32 to vector<128x128xf32>
      %17 = arith.maximumf %15, %16 : vector<128x128xf32>
      %c0_15 = arith.constant 0 : index
      %c0_16 = arith.constant 0 : index
      %18 = vector.load %arg5[%c0_15, %c0_16] : memref<128x128xf32, #tpu.memory_space<vmem>>, vector<128x128xf32>
      %cst_17 = arith.constant dense<0.000000e+00> : vector<128x128xf32>
      %19 = tpu.matmul %17, %18, %cst_17 {dimension_numbers = #tpu.dot_dimension_numbers<[1], [0], [0], [1], [0, 0, 1, 1], [], []>} : vector<128x128xf32>, vector<128x128xf32>, vector<128x128xf32> -> vector<128x128xf32>
      %c0_18 = arith.constant 0 : index
      %c0_19 = arith.constant 0 : index
      %20 = vector.load %arg6[%c0_18, %c0_19] : memref<128x128xf32, #tpu.memory_space<vmem>>, vector<128x128xf32>
      tpu.vector_store %arg6[%c0_18, %c0_19], %19 {strides = array<i32>} : memref<128x128xf32, #tpu.memory_space<vmem>>, vector<128x128xf32>,
    } else {
    }
    return
  }
  func.func @transform_0(%arg0: i32, %arg1: i32) -> (i32, i32) {
    %c0_i32 = arith.constant 0 : i32
    return %arg0, %arg1 : i32, i32
  }
  func.func @transform_1(%arg0: i32, %arg1: i32) -> (i32, i32) {
    %c0_i32 = arith.constant 0 : i32
    %c0_i32_0 = arith.constant 0 : i32
    return %arg1, %c0_i32 : i32, i32
  }
  func.func @transform_2(%arg0: i32, %arg1: i32) -> (i32, i32) {
    %c0_i32 = arith.constant 0 : i32
    %c0_i32_0 = arith.constant 0 : i32
    %c0_i32_1 = arith.constant 0 : i32
    return %c0_i32, %c0_i32_0 : i32, i32
  }
  func.func @transform_3(%arg0: i32, %arg1: i32) -> (i32, i32) {
    %c0_i32 = arith.constant 0 : i32
    %c0_i32_0 = arith.constant 0 : i32
    %c0_i32_1 = arith.constant 0 : i32
    return %c0_i32, %c0_i32_0 : i32, i32
  }
  func.func @transform_4(%arg0: i32, %arg1: i32) -> (i32, i32) {
    %c0_i32 = arith.constant 0 : i32
    %c0_i32_0 = arith.constant 0 : i32
    return %arg0, %c0_i32 : i32, i32
  }
}

module attributes {stable_mosaic.version = 11 : i64} {
  func.func @_layer2_kernel(%arg0: i32, %arg1: i32, %arg2: memref<128x128xf32, #tpu.memory_space<vmem>>, %arg3: memref<128x128xf32, #tpu.memory_space<vmem>>, %arg4: memref<1x128xf32, #tpu.memory_space<vmem>>, %arg5: memref<128x128xf32, #tpu.memory_space<vmem>>, %arg6: memref<128x128xf32, #tpu.memory_space<vmem>>) attributes {dimension_semantics = [#tpu.dimension_semantics<parallel>, #tpu.dimension_semantics<arbitrary>], iteration_bounds = array<i64: 1, 1>, scalar_prefetch = 0 : i64, scratch_operands = 1 : i64, tpu.core_type = #tpu.core_type<tc>, window_params = [{transform_indices = @transform_0, window_bounds = array<i64: 128, 128>}, {transform_indices = @transform_1, window_bounds = array<i64: 128, 128>}, {pipeline_mode = #tpu.pipeline_mode<synchronous>, transform_indices = @transform_2, window_bounds = array<i64: 1, 128>}, {transform_indices = @transform_3, window_bounds = array<i64: 128, 128>}]} {
    %c0_i32 = arith.constant 0 : i32
    %0 = arith.cmpi eq, %arg1, %c0_i32 : i32
    %1 = arith.extui %0 : i1 to i32
    %c0_i32_0 = arith.constant 0 : i32
    %2 = arith.cmpi ne, %1, %c0_i32_0 : i32
    scf.if %2 {
      %cst_10 = arith.constant 0.000000e+00 : f32
      %12 = vector.broadcast %cst_10 : f32 to vector<128x128xf32>
      %c0_11 = arith.constant 0 : index
      %c0_12 = arith.constant 0 : index
      %13 = vector.load %arg6[%c0_11, %c0_12] : memref<128x128xf32, #tpu.memory_space<vmem>>, vector<128x128xf32>
      tpu.vector_store %arg6[%c0_11, %c0_12], %12 {strides = array<i32>} : memref<128x128xf32, #tpu.memory_space<vmem>>, vector<128x128xf32>,
    } else {
    }
    %c0 = arith.constant 0 : index
    %c0_1 = arith.constant 0 : index
    %3 = vector.load %arg6[%c0, %c0_1] : memref<128x128xf32, #tpu.memory_space<vmem>>, vector<128x128xf32>
    %c0_2 = arith.constant 0 : index
    %c0_3 = arith.constant 0 : index
    %4 = vector.load %arg2[%c0_2, %c0_3] : memref<128x128xf32, #tpu.memory_space<vmem>>, vector<128x128xf32>
    %c0_4 = arith.constant 0 : index
    %c0_5 = arith.constant 0 : index
    %5 = vector.load %arg3[%c0_4, %c0_5] : memref<128x128xf32, #tpu.memory_space<vmem>>, vector<128x128xf32>
    %cst = arith.constant dense<0.000000e+00> : vector<128x128xf32>
    %6 = tpu.matmul %4, %5, %cst {dimension_numbers = #tpu.dot_dimension_numbers<[1], [0], [0], [1], [0, 0, 1, 1], [], []>} : vector<128x128xf32>, vector<128x128xf32>, vector<128x128xf32> -> vector<128x128xf32>
    %7 = arith.addf %3, %6 : vector<128x128xf32>
    %c0_6 = arith.constant 0 : index
    %c0_7 = arith.constant 0 : index
    %8 = vector.load %arg6[%c0_6, %c0_7] : memref<128x128xf32, #tpu.memory_space<vmem>>, vector<128x128xf32>
    tpu.vector_store %arg6[%c0_6, %c0_7], %7 {strides = array<i32>} : memref<128x128xf32, #tpu.memory_space<vmem>>, vector<128x128xf32>,
    %c0_i32_8 = arith.constant 0 : i32
    %9 = arith.cmpi eq, %arg1, %c0_i32_8 : i32
    %10 = arith.extui %9 : i1 to i32
    %c0_i32_9 = arith.constant 0 : i32
    %11 = arith.cmpi ne, %10, %c0_i32_9 : i32
    scf.if %11 {
      %c0_10 = arith.constant 0 : index
      %c0_11 = arith.constant 0 : index
      %12 = vector.load %arg6[%c0_10, %c0_11] : memref<128x128xf32, #tpu.memory_space<vmem>>, vector<128x128xf32>
      %c0_12 = arith.constant 0 : index
      %c0_13 = arith.constant 0 : index
      %13 = vector.load %arg4[%c0_12, %c0_13] : memref<1x128xf32, #tpu.memory_space<vmem>>, vector<1x128xf32>
      %14 = vector.broadcast %13 : vector<1x128xf32> to vector<128x128xf32>
      %15 = arith.addf %12, %14 : vector<128x128xf32>
      %c0_14 = arith.constant 0 : index
      %c0_15 = arith.constant 0 : index
      %16 = vector.load %arg5[%c0_14, %c0_15] : memref<128x128xf32, #tpu.memory_space<vmem>>, vector<128x128xf32>
      tpu.vector_store %arg5[%c0_14, %c0_15], %15 {strides = array<i32>} : memref<128x128xf32, #tpu.memory_space<vmem>>, vector<128x128xf32>,
    } else {
    }
    return
  }
  func.func @transform_0(%arg0: i32, %arg1: i32) -> (i32, i32) {
    %c0_i32 = arith.constant 0 : i32
    return %arg0, %arg1 : i32, i32
  }
  func.func @transform_1(%arg0: i32, %arg1: i32) -> (i32, i32) {
    %c0_i32 = arith.constant 0 : i32
    %c0_i32_0 = arith.constant 0 : i32
    return %arg1, %c0_i32 : i32, i32
  }
  func.func @transform_2(%arg0: i32, %arg1: i32) -> (i32, i32) {
    %c0_i32 = arith.constant 0 : i32
    %c0_i32_0 = arith.constant 0 : i32
    %c0_i32_1 = arith.constant 0 : i32
    return %c0_i32, %c0_i32_0 : i32, i32
  }
  func.func @transform_3(%arg0: i32, %arg1: i32) -> (i32, i32) {
    %c0_i32 = arith.constant 0 : i32
    %c0_i32_0 = arith.constant 0 : i32
    return %arg0, %c0_i32 : i32, i32
  }
}

</mosaic_0001>

<llo_original>
// kernel: gcn_forward.3
$region0: #{gcn_forward.3}
  #allocation0 [shape = 'u32[]', space=smem, size = 0x4, offset = 0x4, fixed_abs, tag = 'smem constant byte address 0x4 - core index']
  #allocation1 [shape = 'u32[144,128]{1,0:T(1,128)}', space=vmem, size = 0x12000, scoped, tag = 'internal scratch']
  #allocation2 [shape = 'f32[128,128]{1,0:T(8,128)}', space=vmem, size = 0x10000, scoped, tag = 'scratch operand']
  %s0 = inlined_call_operand.vmem [shape: f32[128,128], index: 0, kind: input, shape index: {}]
  %s1 = inlined_call_operand.vmem [shape: f32[128,128], index: 1, kind: input, shape index: {}]
  %s2 = inlined_call_operand.vmem [shape: f32[128,128], index: 2, kind: output, shape index: {}]
  %s3 = sld [smem:[#allocation0]]
  $region26: #{gcn_forward.3} parent=0
    _
  %s5 = ssub.s32 1, %s3
  %s6 = scalar_select 0, %s5, %s3
  // Predicated region
  $region2: #{gcn_forward.3} parent=0 // pred_check
    _
  $region3: #{gcn_forward.3} parent=0 // pred_check_branch
    %8 = sbr.rel (0) target = $region5
  $region4: #{gcn_forward.3} parent=0 // pred_region
    _
  $region5: #{gcn_forward.3} parent=0 // pred_fallthru
    _
  // Predicated region
  $region6: #{gcn_forward.3} parent=0 // pred_check
    _
  $region7: #{gcn_forward.3} parent=0 // pred_check_branch
    %10 = sbr.rel (0) target = $region9
  $region8: #{gcn_forward.3} parent=0 // pred_region
    _
  $region9: #{gcn_forward.3} parent=0 // pred_fallthru
    _
  %p11 = scmp.eq.s32.totalorder 0, 0
  // Predicated region
  $region10: #{gcn_forward.3} parent=0 // pred_check
    %p12 = pneg %p11
  $region11: #{gcn_forward.3} parent=0 // pred_check_branch
    %14 = sbr.rel (%p12) target = $region13
  $region12: #{gcn_forward.3} parent=0 // pred_region
    %15 = vst [vmem:[#allocation2] sm:$0xff] 0.0
    %16 = vst [vmem:[#allocation2 + $0x8] sm:$0xff] 0.0
    %17 = vst [vmem:[#allocation2 + $0x10] sm:$0xff] 0.0
    %18 = vst [vmem:[#allocation2 + $0x18] sm:$0xff] 0.0
    %19 = vst [vmem:[#allocation2 + $0x20] sm:$0xff] 0.0
    %20 = vst [vmem:[#allocation2 + $0x28] sm:$0xff] 0.0
    %21 = vst [vmem:[#allocation2 + $0x30] sm:$0xff] 0.0
    %22 = vst [vmem:[#allocation2 + $0x38] sm:$0xff] 0.0
    %23 = vst [vmem:[#allocation2 + $0x40] sm:$0xff] 0.0
    %24 = vst [vmem:[#allocation2 + $0x48] sm:$0xff] 0.0
    %25 = vst [vmem:[#allocation2 + $0x50] sm:$0xff] 0.0
    %26 = vst [vmem:[#allocation2 + $0x58] sm:$0xff] 0.0
    %27 = vst [vmem:[#allocation2 + $0x60] sm:$0xff] 0.0
    %28 = vst [vmem:[#allocation2 + $0x68] sm:$0xff] 0.0
    %29 = vst [vmem:[#allocation2 + $0x70] sm:$0xff] 0.0
    %30 = vst [vmem:[#allocation2 + $0x78] sm:$0xff] 0.0
  $region13: #{gcn_forward.3} parent=0 // pred_fallthru
    _
  %v31 = vld [vmem:[#allocation2] sm:$0xff]
  %v32 = vld [vmem:[#allocation2 + $0x8] sm:$0xff]
  %v33 = vld [vmem:[#allocation2 + $0x10] sm:$0xff]
  %v34 = vld [vmem:[#allocation2 + $0x18] sm:$0xff]
  %v35 = vld [vmem:[#allocation2 + $0x20] sm:$0xff]
  %v36 = vld [vmem:[#allocation2 + $0x28] sm:$0xff]
  %v37 = vld [vmem:[#allocation2 + $0x30] sm:$0xff]
  %v38 = vld [vmem:[#allocation2 + $0x38] sm:$0xff]
  %v39 = vld [vmem:[#allocation2 + $0x40] sm:$0xff]
  %v40 = vld [vmem:[#allocation2 + $0x48] sm:$0xff]
  %v41 = vld [vmem:[#allocation2 + $0x50] sm:$0xff]
  %v42 = vld [vmem:[#allocation2 + $0x58] sm:$0xff]
  %v43 = vld [vmem:[#allocation2 + $0x60] sm:$0xff]
  %v44 = vld [vmem:[#allocation2 + $0x68] sm:$0xff]
  %v45 = vld [vmem:[#allocation2 + $0x70] sm:$0xff]
  %v46 = vld [vmem:[#allocation2 + $0x78] sm:$0xff]
  %v47 = vld [vmem:[%s0] sm:$0xff]
  %v48 = vld [vmem:[%s0 + $0x8] sm:$0xff]
  %v49 = vld [vmem:[%s0 + $0x10] sm:$0xff]
  %v50 = vld [vmem:[%s0 + $0x18] sm:$0xff]
  %v51 = vld [vmem:[%s0 + $0x20] sm:$0xff]
  %v52 = vld [vmem:[%s0 + $0x28] sm:$0xff]
  %v53 = vld [vmem:[%s0 + $0x30] sm:$0xff]
  %v54 = vld [vmem:[%s0 + $0x38] sm:$0xff]
  %v55 = vld [vmem:[%s0 + $0x40] sm:$0xff]
  %v56 = vld [vmem:[%s0 + $0x48] sm:$0xff]
  %v57 = vld [vmem:[%s0 + $0x50] sm:$0xff]
  %v58 = vld [vmem:[%s0 + $0x58] sm:$0xff]
  %v59 = vld [vmem:[%s0 + $0x60] sm:$0xff]
  %v60 = vld [vmem:[%s0 + $0x68] sm:$0xff]
  %v61 = vld [vmem:[%s0 + $0x70] sm:$0xff]
  %v62 = vld [vmem:[%s0 + $0x78] sm:$0xff]
  %v63 = vld [vmem:[%s1] sm:$0xff]
  %v64 = vld [vmem:[%s1 + $0x8] sm:$0xff]
  %v65 = vld [vmem:[%s1 + $0x10] sm:$0xff]
  %v66 = vld [vmem:[%s1 + $0x18] sm:$0xff]
  %v67 = vld [vmem:[%s1 + $0x20] sm:$0xff]
  %v68 = vld [vmem:[%s1 + $0x28] sm:$0xff]
  %v69 = vld [vmem:[%s1 + $0x30] sm:$0xff]
  %v70 = vld [vmem:[%s1 + $0x38] sm:$0xff]
  %v71 = vld [vmem:[%s1 + $0x40] sm:$0xff]
  %v72 = vld [vmem:[%s1 + $0x48] sm:$0xff]
  %v73 = vld [vmem:[%s1 + $0x50] sm:$0xff]
  %v74 = vld [vmem:[%s1 + $0x58] sm:$0xff]
  %v75 = vld [vmem:[%s1 + $0x60] sm:$0xff]
  %v76 = vld [vmem:[%s1 + $0x68] sm:$0xff]
  %v77 = vld [vmem:[%s1 + $0x70] sm:$0xff]
  %v78 = vld [vmem:[%s1 + $0x78] sm:$0xff]
  %79 = vmatprep.subr.mxu0 0.0
  %80 = vmatpush1.msra.mxu0 %v63
  %81 = vmatprep.subr.mxu0 0.0
  %82 = vmatpush1.msra.mxu0 %v64
  %83 = vmatprep.subr.mxu0 0.0
  %84 = vmatpush1.msra.mxu0 %v65
  %85 = vmatprep.subr.mxu0 0.0
  %86 = vmatpush1.msra.mxu0 %v66
  %87 = vmatprep.subr.mxu0 0.0
  %88 = vmatpush1.msra.mxu0 %v67
  %89 = vmatprep.subr.mxu0 0.0
  %90 = vmatpush1.msra.mxu0 %v68
  %91 = vmatprep.subr.mxu0 0.0
  %92 = vmatpush1.msra.mxu0 %v69
  %93 = vmatprep.subr.mxu0 0.0
  %94 = vmatpush1.msra.mxu0 %v70
  %95 = vmatprep.subr.mxu0 0.0
  %96 = vmatpush1.msra.mxu0 %v71
  %97 = vmatprep.subr.mxu0 0.0
  %98 = vmatpush1.msra.mxu0 %v72
  %99 = vmatprep.subr.mxu0 0.0
  %100 = vmatpush1.msra.mxu0 %v73
  %101 = vmatprep.subr.mxu0 0.0
  %102 = vmatpush1.msra.mxu0 %v74
  %103 = vmatprep.subr.mxu0 0.0
  %104 = vmatpush1.msra.mxu0 %v75
  %105 = vmatprep.subr.mxu0 0.0
  %106 = vmatpush1.msra.mxu0 %v76
  %107 = vmatprep.subr.mxu0 0.0
  %108 = vmatpush1.msra.mxu0 %v77
  %109 = vmatprep.subr.mxu0 0.0
  %110 = vmatpush1.msra.mxu0 %v78
  %111 = vmatprep.subr.mxu0 0.0
  %112 = vmatpush1.msra.mxu0 0.0
  %113 = vmatprep.subr.mxu0 0.0
  %114 = vmatpush1.msra.mxu0 0.0
  %115 = vmatprep.subr.mxu0 0.0
  %116 = vmatpush1.msra.mxu0 0.0
  %117 = vmatprep.subr.mxu0 0.0
  %118 = vmatpush1.msra.mxu0 0.0
  %119 = vmatprep.subr.mxu0 0.0
  %120 = vmatpush1.msra.mxu0 0.0
  %121 = vmatprep.subr.mxu0 0.0
  %122 = vmatpush1.msra.mxu0 0.0
  %123 = vmatprep.subr.mxu0 0.0
  %124 = vmatpush1.msra.mxu0 0.0
  %125 = vmatprep.subr.mxu0 0.0
  %126 = vmatpush1.msra.mxu0 0.0
  %127 = vmatprep.subr.mxu0 0.0
  %128 = vmatpush1.msra.mxu0 0.0
  %129 = vmatprep.subr.mxu0 0.0
  %130 = vmatpush1.msra.mxu0 0.0
  %131 = vmatprep.subr.mxu0 0.0
  %132 = vmatpush1.msra.mxu0 0.0
  %133 = vmatprep.subr.mxu0 0.0
  %134 = vmatpush1.msra.mxu0 0.0
  %135 = vmatprep.subr.mxu0 0.0
  %136 = vmatpush1.msra.mxu0 0.0
  %137 = vmatprep.subr.mxu0 0.0
  %138 = vmatpush1.msra.mxu0 0.0
  %139 = vmatprep.subr.mxu0 0.0
  %140 = vmatpush1.msra.mxu0 0.0
  %141 = vmatprep.subr.mxu0 0.0
  %142 = vmatpush1.msra.mxu0 0.0
  %143 = vmatprep.mubr.f32.mxu0 0.0
  %144 = vmatmul.mubr.f32.gmra.mrb[0].mxu0 %v47
  %v145 = vpop.f32.mrb[0].mxu0
  %v146 = vadd.f32 0.0, %v145
  %v147 = vpop.f32.mrb[0].mxu0
  %148 = vmatprep.mubr.f32.mxu0 0.0
  %149 = vmatmul.mubr.f32.gmra.mrb[0].mxu0 %v48
  %v150 = vpop.f32.mrb[0].mxu0
  %v151 = vadd.f32 0.0, %v150
  %v152 = vpop.f32.mrb[0].mxu0
  %153 = vmatprep.mubr.f32.mxu0 0.0
  %154 = vmatmul.mubr.f32.gmra.mrb[0].mxu0 %v49
  %v155 = vpop.f32.mrb[0].mxu0
  %v156 = vadd.f32 0.0, %v155
  %v157 = vpop.f32.mrb[0].mxu0
  %158 = vmatprep.mubr.f32.mxu0 0.0
  %159 = vmatmul.mubr.f32.gmra.mrb[0].mxu0 %v50
  %v160 = vpop.f32.mrb[0].mxu0
  %v161 = vadd.f32 0.0, %v160
  %v162 = vpop.f32.mrb[0].mxu0
  %163 = vmatprep.mubr.f32.mxu0 0.0
  %164 = vmatmul.mubr.f32.gmra.mrb[0].mxu0 %v51
  %v165 = vpop.f32.mrb[0].mxu0
  %v166 = vadd.f32 0.0, %v165
  %v167 = vpop.f32.mrb[0].mxu0
  %168 = vmatprep.mubr.f32.mxu0 0.0
  %169 = vmatmul.mubr.f32.gmra.mrb[0].mxu0 %v52
  %v170 = vpop.f32.mrb[0].mxu0
  %v171 = vadd.f32 0.0, %v170
  %v172 = vpop.f32.mrb[0].mxu0
  %173 = vmatprep.mubr.f32.mxu0 0.0
  %174 = vmatmul.mubr.f32.gmra.mrb[0].mxu0 %v53
  %v175 = vpop.f32.mrb[0].mxu0
  %v176 = vadd.f32 0.0, %v175
  %v177 = vpop.f32.mrb[0].mxu0
  %178 = vmatprep.mubr.f32.mxu0 0.0
  %179 = vmatmul.mubr.f32.gmra.mrb[0].mxu0 %v54
  %v180 = vpop.f32.mrb[0].mxu0
  %v181 = vadd.f32 0.0, %v180
  %v182 = vpop.f32.mrb[0].mxu0
  %183 = vmatprep.mubr.f32.mxu0 0.0
  %184 = vmatmul.mubr.f32.gmra.mrb[0].mxu0 %v55
  %v185 = vpop.f32.mrb[0].mxu0
  %v186 = vadd.f32 0.0, %v185
  %v187 = vpop.f32.mrb[0].mxu0
  %188 = vmatprep.mubr.f32.mxu0 0.0
  %189 = vmatmul.mubr.f32.gmra.mrb[0].mxu0 %v56
  %v190 = vpop.f32.mrb[0].mxu0
  %v191 = vadd.f32 0.0, %v190
  %v192 = vpop.f32.mrb[0].mxu0
  %193 = vmatprep.mubr.f32.mxu0 0.0
  %194 = vmatmul.mubr.f32.gmra.mrb[0].mxu0 %v57
  %v195 = vpop.f32.mrb[0].mxu0
  %v196 = vadd.f32 0.0, %v195
  %v197 = vpop.f32.mrb[0].mxu0
  %198 = vmatprep.mubr.f32.mxu0 0.0
  %199 = vmatmul.mubr.f32.gmra.mrb[0].mxu0 %v58
  %v200 = vpop.f32.mrb[0].mxu0
  %v201 = vadd.f32 0.0, %v200
  %v202 = vpop.f32.mrb[0].mxu0
  %203 = vmatprep.mubr.f32.mxu0 0.0
  %204 = vmatmul.mubr.f32.gmra.mrb[0].mxu0 %v59
  %v205 = vpop.f32.mrb[0].mxu0
  %v206 = vadd.f32 0.0, %v205
  %v207 = vpop.f32.mrb[0].mxu0
  %208 = vmatprep.mubr.f32.mxu0 0.0
  %209 = vmatmul.mubr.f32.gmra.mrb[0].mxu0 %v60
  %v210 = vpop.f32.mrb[0].mxu0
  %v211 = vadd.f32 0.0, %v210
  %v212 = vpop.f32.mrb[0].mxu0
  %213 = vmatprep.mubr.f32.mxu0 0.0
  %214 = vmatmul.mubr.f32.gmra.mrb[0].mxu0 %v61
  %v215 = vpop.f32.mrb[0].mxu0
  %v216 = vadd.f32 0.0, %v215
  %v217 = vpop.f32.mrb[0].mxu0
  %218 = vmatprep.mubr.f32.mxu0 0.0
  %219 = vmatmul.mubr.f32.gmra.mrb[0].mxu0 %v62
  %v220 = vpop.f32.mrb[0].mxu0
  %v221 = vadd.f32 0.0, %v220
  %v222 = vpop.f32.mrb[0].mxu0
  %223 = vdwg.mxu0
  %v224 = vadd.f32 %v31, %v146
  %v225 = vadd.f32 %v32, %v151
  %v226 = vadd.f32 %v33, %v156
  %v227 = vadd.f32 %v34, %v161
  %v228 = vadd.f32 %v35, %v166
  %v229 = vadd.f32 %v36, %v171
  %v230 = vadd.f32 %v37, %v176
  %v231 = vadd.f32 %v38, %v181
  %v232 = vadd.f32 %v39, %v186
  %v233 = vadd.f32 %v40, %v191
  %v234 = vadd.f32 %v41, %v196
  %v235 = vadd.f32 %v42, %v201
  %v236 = vadd.f32 %v43, %v206
  %v237 = vadd.f32 %v44, %v211
  %v238 = vadd.f32 %v45, %v216
  %v239 = vadd.f32 %v46, %v221
  %240 = vst [vmem:[#allocation2] sm:$0xff] %v224
  %241 = vst [vmem:[#allocation2 + $0x8] sm:$0xff] %v225
  %242 = vst [vmem:[#allocation2 + $0x10] sm:$0xff] %v226
  %243 = vst [vmem:[#allocation2 + $0x18] sm:$0xff] %v227
  %244 = vst [vmem:[#allocation2 + $0x20] sm:$0xff] %v228
  %245 = vst [vmem:[#allocation2 + $0x28] sm:$0xff] %v229
  %246 = vst [vmem:[#allocation2 + $0x30] sm:$0xff] %v230
  %247 = vst [vmem:[#allocation2 + $0x38] sm:$0xff] %v231
  %248 = vst [vmem:[#allocation2 + $0x40] sm:$0xff] %v232
  %249 = vst [vmem:[#allocation2 + $0x48] sm:$0xff] %v233
  %250 = vst [vmem:[#allocation2 + $0x50] sm:$0xff] %v234
  %251 = vst [vmem:[#allocation2 + $0x58] sm:$0xff] %v235
  %252 = vst [vmem:[#allocation2 + $0x60] sm:$0xff] %v236
  %253 = vst [vmem:[#allocation2 + $0x68] sm:$0xff] %v237
  %254 = vst [vmem:[#allocation2 + $0x70] sm:$0xff] %v238
  %255 = vst [vmem:[#allocation2 + $0x78] sm:$0xff] %v239
  // Predicated region
  $region14: #{gcn_forward.3} parent=0 // pred_check
    %p256 = pneg %p11
  $region15: #{gcn_forward.3} parent=0 // pred_check_branch
    %258 = sbr.rel (%p256) target = $region17
  $region16: #{gcn_forward.3} parent=0 // pred_region
    %v259 = vld [vmem:[#allocation2] sm:$0xff]
    %v260 = vld [vmem:[#allocation2 + $0x8] sm:$0xff]
    %v261 = vld [vmem:[#allocation2 + $0x10] sm:$0xff]
    %v262 = vld [vmem:[#allocation2 + $0x18] sm:$0xff]
    %v263 = vld [vmem:[#allocation2 + $0x20] sm:$0xff]
    %v264 = vld [vmem:[#allocation2 + $0x28] sm:$0xff]
    %v265 = vld [vmem:[#allocation2 + $0x30] sm:$0xff]
    %v266 = vld [vmem:[#allocation2 + $0x38] sm:$0xff]
    %v267 = vld [vmem:[#allocation2 + $0x40] sm:$0xff]
    %v268 = vld [vmem:[#allocation2 + $0x48] sm:$0xff]
    %v269 = vld [vmem:[#allocation2 + $0x50] sm:$0xff]
    %v270 = vld [vmem:[#allocation2 + $0x58] sm:$0xff]
    %v271 = vld [vmem:[#allocation2 + $0x60] sm:$0xff]
    %v272 = vld [vmem:[#allocation2 + $0x68] sm:$0xff]
    %v273 = vld [vmem:[#allocation2 + $0x70] sm:$0xff]
    %v274 = vld [vmem:[#allocation2 + $0x78] sm:$0xff]
    %275 = vst [vmem:[%s2] sm:$0xff] %v259
    %276 = vst [vmem:[%s2 + $0x8] sm:$0xff] %v260
    %277 = vst [vmem:[%s2 + $0x10] sm:$0xff] %v261
    %278 = vst [vmem:[%s2 + $0x18] sm:$0xff] %v262
    %279 = vst [vmem:[%s2 + $0x20] sm:$0xff] %v263
    %280 = vst [vmem:[%s2 + $0x28] sm:$0xff] %v264
    %281 = vst [vmem:[%s2 + $0x30] sm:$0xff] %v265
    %282 = vst [vmem:[%s2 + $0x38] sm:$0xff] %v266
    %283 = vst [vmem:[%s2 + $0x40] sm:$0xff] %v267
    %284 = vst [vmem:[%s2 + $0x48] sm:$0xff] %v268
    %285 = vst [vmem:[%s2 + $0x50] sm:$0xff] %v269
    %286 = vst [vmem:[%s2 + $0x58] sm:$0xff] %v270
    %287 = vst [vmem:[%s2 + $0x60] sm:$0xff] %v271
    %288 = vst [vmem:[%s2 + $0x68] sm:$0xff] %v272
    %289 = vst [vmem:[%s2 + $0x70] sm:$0xff] %v273
    %290 = vst [vmem:[%s2 + $0x78] sm:$0xff] %v274
  $region17: #{gcn_forward.3} parent=0 // pred_fallthru
    _
  // Predicated region
  $region18: #{gcn_forward.3} parent=0 // pred_check
    _
  $region19: #{gcn_forward.3} parent=0 // pred_check_branch
    %292 = sbr.rel (0) target = $region21
  $region20: #{gcn_forward.3} parent=0 // pred_region
    _
  $region21: #{gcn_forward.3} parent=0 // pred_fallthru
    _
  // Predicated region
  $region22: #{gcn_forward.3} parent=0 // pred_check
    _
  $region23: #{gcn_forward.3} parent=0 // pred_check_branch
    %294 = sbr.rel (0) target = $region25
  $region24: #{gcn_forward.3} parent=0 // pred_region
    _
  $region25: #{gcn_forward.3} parent=0 // pred_fallthru
    _

// kernel: gcn_forward.5
$region0: #{gcn_forward.5}
  #allocation0 [shape = 'u32[]', space=smem, size = 0x4, offset = 0x4, fixed_abs, tag = 'smem constant byte address 0x4 - core index']
  #allocation1 [shape = 'u32[144,128]{1,0:T(1,128)}', space=vmem, size = 0x12000, scoped, tag = 'internal scratch']
  #allocation2 [shape = 'f32[128,128]{1,0:T(8,128)}', space=vmem, size = 0x10000, scoped, tag = 'scratch operand']
  %s0 = inlined_call_operand.vmem [shape: f32[128,128], index: 0, kind: input, shape index: {}]
  %s1 = inlined_call_operand.vmem [shape: f32[128,128], index: 1, kind: input, shape index: {}]
  %s2 = inlined_call_operand.vmem [shape: f32[1,128], index: 2, kind: input, shape index: {}]
  %s3 = inlined_call_operand.vmem [shape: f32[128,128], index: 3, kind: output, shape index: {}]
  %s4 = sld [smem:[#allocation0]]
  $region30: #{gcn_forward.5} parent=0
    _
  %s6 = ssub.s32 1, %s4
  %s7 = scalar_select 0, %s6, %s4
  // Predicated region
  $region2: #{gcn_forward.5} parent=0 // pred_check
    _
  $region3: #{gcn_forward.5} parent=0 // pred_check_branch
    %9 = sbr.rel (0) target = $region5
  $region4: #{gcn_forward.5} parent=0 // pred_region
    _
  $region5: #{gcn_forward.5} parent=0 // pred_fallthru
    _
  // Predicated region
  $region6: #{gcn_forward.5} parent=0 // pred_check
    _
  $region7: #{gcn_forward.5} parent=0 // pred_check_branch
    %11 = sbr.rel (0) target = $region9
  $region8: #{gcn_forward.5} parent=0 // pred_region
    _
  $region9: #{gcn_forward.5} parent=0 // pred_fallthru
    _
  // Predicated region
  $region10: #{gcn_forward.5} parent=0 // pred_check
    _
  $region11: #{gcn_forward.5} parent=0 // pred_check_branch
    %13 = sbr.rel (0) target = $region13
  $region12: #{gcn_forward.5} parent=0 // pred_region
    _
  $region13: #{gcn_forward.5} parent=0 // pred_fallthru
    _
  %p14 = scmp.eq.s32.totalorder 0, 0
  // Predicated region
  $region14: #{gcn_forward.5} parent=0 // pred_check
    %p15 = pneg %p14
  $region15: #{gcn_forward.5} parent=0 // pred_check_branch
    %17 = sbr.rel (%p15) target = $region17
  $region16: #{gcn_forward.5} parent=0 // pred_region
    %18 = vst [vmem:[#allocation2] sm:$0xff] 0.0
    %19 = vst [vmem:[#allocation2 + $0x8] sm:$0xff] 0.0
    %20 = vst [vmem:[#allocation2 + $0x10] sm:$0xff] 0.0
    %21 = vst [vmem:[#allocation2 + $0x18] sm:$0xff] 0.0
    %22 = vst [vmem:[#allocation2 + $0x20] sm:$0xff] 0.0
    %23 = vst [vmem:[#allocation2 + $0x28] sm:$0xff] 0.0
    %24 = vst [vmem:[#allocation2 + $0x30] sm:$0xff] 0.0
    %25 = vst [vmem:[#allocation2 + $0x38] sm:$0xff] 0.0
    %26 = vst [vmem:[#allocation2 + $0x40] sm:$0xff] 0.0
    %27 = vst [vmem:[#allocation2 + $0x48] sm:$0xff] 0.0
    %28 = vst [vmem:[#allocation2 + $0x50] sm:$0xff] 0.0
    %29 = vst [vmem:[#allocation2 + $0x58] sm:$0xff] 0.0
    %30 = vst [vmem:[#allocation2 + $0x60] sm:$0xff] 0.0
    %31 = vst [vmem:[#allocation2 + $0x68] sm:$0xff] 0.0
    %32 = vst [vmem:[#allocation2 + $0x70] sm:$0xff] 0.0
    %33 = vst [vmem:[#allocation2 + $0x78] sm:$0xff] 0.0
  $region17: #{gcn_forward.5} parent=0 // pred_fallthru
    _
  %v34 = vld [vmem:[#allocation2] sm:$0xff]
  %v35 = vld [vmem:[#allocation2 + $0x8] sm:$0xff]
  %v36 = vld [vmem:[#allocation2 + $0x10] sm:$0xff]
  %v37 = vld [vmem:[#allocation2 + $0x18] sm:$0xff]
  %v38 = vld [vmem:[#allocation2 + $0x20] sm:$0xff]
  %v39 = vld [vmem:[#allocation2 + $0x28] sm:$0xff]
  %v40 = vld [vmem:[#allocation2 + $0x30] sm:$0xff]
  %v41 = vld [vmem:[#allocation2 + $0x38] sm:$0xff]
  %v42 = vld [vmem:[#allocation2 + $0x40] sm:$0xff]
  %v43 = vld [vmem:[#allocation2 + $0x48] sm:$0xff]
  %v44 = vld [vmem:[#allocation2 + $0x50] sm:$0xff]
  %v45 = vld [vmem:[#allocation2 + $0x58] sm:$0xff]
  %v46 = vld [vmem:[#allocation2 + $0x60] sm:$0xff]
  %v47 = vld [vmem:[#allocation2 + $0x68] sm:$0xff]
  %v48 = vld [vmem:[#allocation2 + $0x70] sm:$0xff]
  %v49 = vld [vmem:[#allocation2 + $0x78] sm:$0xff]
  %v50 = vld [vmem:[%s0] sm:$0xff]
  %v51 = vld [vmem:[%s0 + $0x8] sm:$0xff]
  %v52 = vld [vmem:[%s0 + $0x10] sm:$0xff]
  %v53 = vld [vmem:[%s0 + $0x18] sm:$0xff]
  %v54 = vld [vmem:[%s0 + $0x20] sm:$0xff]
  %v55 = vld [vmem:[%s0 + $0x28] sm:$0xff]
  %v56 = vld [vmem:[%s0 + $0x30] sm:$0xff]
  %v57 = vld [vmem:[%s0 + $0x38] sm:$0xff]
  %v58 = vld [vmem:[%s0 + $0x40] sm:$0xff]
  %v59 = vld [vmem:[%s0 + $0x48] sm:$0xff]
  %v60 = vld [vmem:[%s0 + $0x50] sm:$0xff]
  %v61 = vld [vmem:[%s0 + $0x58] sm:$0xff]
  %v62 = vld [vmem:[%s0 + $0x60] sm:$0xff]
  %v63 = vld [vmem:[%s0 + $0x68] sm:$0xff]
  %v64 = vld [vmem:[%s0 + $0x70] sm:$0xff]
  %v65 = vld [vmem:[%s0 + $0x78] sm:$0xff]
  %v66 = vld [vmem:[%s1] sm:$0xff]
  %v67 = vld [vmem:[%s1 + $0x8] sm:$0xff]
  %v68 = vld [vmem:[%s1 + $0x10] sm:$0xff]
  %v69 = vld [vmem:[%s1 + $0x18] sm:$0xff]
  %v70 = vld [vmem:[%s1 + $0x20] sm:$0xff]
  %v71 = vld [vmem:[%s1 + $0x28] sm:$0xff]
  %v72 = vld [vmem:[%s1 + $0x30] sm:$0xff]
  %v73 = vld [vmem:[%s1 + $0x38] sm:$0xff]
  %v74 = vld [vmem:[%s1 + $0x40] sm:$0xff]
  %v75 = vld [vmem:[%s1 + $0x48] sm:$0xff]
  %v76 = vld [vmem:[%s1 + $0x50] sm:$0xff]
  %v77 = vld [vmem:[%s1 + $0x58] sm:$0xff]
  %v78 = vld [vmem:[%s1 + $0x60] sm:$0xff]
  %v79 = vld [vmem:[%s1 + $0x68] sm:$0xff]
  %v80 = vld [vmem:[%s1 + $0x70] sm:$0xff]
  %v81 = vld [vmem:[%s1 + $0x78] sm:$0xff]
  %82 = vmatprep.subr.mxu0 0.0
  %83 = vmatpush1.msra.mxu0 %v66
  %84 = vmatprep.subr.mxu0 0.0
  %85 = vmatpush1.msra.mxu0 %v67
  %86 = vmatprep.subr.mxu0 0.0
  %87 = vmatpush1.msra.mxu0 %v68
  %88 = vmatprep.subr.mxu0 0.0
  %89 = vmatpush1.msra.mxu0 %v69
  %90 = vmatprep.subr.mxu0 0.0
  %91 = vmatpush1.msra.mxu0 %v70
  %92 = vmatprep.subr.mxu0 0.0
  %93 = vmatpush1.msra.mxu0 %v71
  %94 = vmatprep.subr.mxu0 0.0
  %95 = vmatpush1.msra.mxu0 %v72
  %96 = vmatprep.subr.mxu0 0.0
  %97 = vmatpush1.msra.mxu0 %v73
  %98 = vmatprep.subr.mxu0 0.0
  %99 = vmatpush1.msra.mxu0 %v74
  %100 = vmatprep.subr.mxu0 0.0
  %101 = vmatpush1.msra.mxu0 %v75
  %102 = vmatprep.subr.mxu0 0.0
  %103 = vmatpush1.msra.mxu0 %v76
  %104 = vmatprep.subr.mxu0 0.0
  %105 = vmatpush1.msra.mxu0 %v77
  %106 = vmatprep.subr.mxu0 0.0
  %107 = vmatpush1.msra.mxu0 %v78
  %108 = vmatprep.subr.mxu0 0.0
  %109 = vmatpush1.msra.mxu0 %v79
  %110 = vmatprep.subr.mxu0 0.0
  %111 = vmatpush1.msra.mxu0 %v80
  %112 = vmatprep.subr.mxu0 0.0
  %113 = vmatpush1.msra.mxu0 %v81
  %114 = vmatprep.subr.mxu0 0.0
  %115 = vmatpush1.msra.mxu0 0.0
  %116 = vmatprep.subr.mxu0 0.0
  %117 = vmatpush1.msra.mxu0 0.0
  %118 = vmatprep.subr.mxu0 0.0
  %119 = vmatpush1.msra.mxu0 0.0
  %120 = vmatprep.subr.mxu0 0.0
  %121 = vmatpush1.msra.mxu0 0.0
  %122 = vmatprep.subr.mxu0 0.0
  %123 = vmatpush1.msra.mxu0 0.0
  %124 = vmatprep.subr.mxu0 0.0
  %125 = vmatpush1.msra.mxu0 0.0
  %126 = vmatprep.subr.mxu0 0.0
  %127 = vmatpush1.msra.mxu0 0.0
  %128 = vmatprep.subr.mxu0 0.0
  %129 = vmatpush1.msra.mxu0 0.0
  %130 = vmatprep.subr.mxu0 0.0
  %131 = vmatpush1.msra.mxu0 0.0
  %132 = vmatprep.subr.mxu0 0.0
  %133 = vmatpush1.msra.mxu0 0.0
  %134 = vmatprep.subr.mxu0 0.0
  %135 = vmatpush1.msra.mxu0 0.0
  %136 = vmatprep.subr.mxu0 0.0
  %137 = vmatpush1.msra.mxu0 0.0
  %138 = vmatprep.subr.mxu0 0.0
  %139 = vmatpush1.msra.mxu0 0.0
  %140 = vmatprep.subr.mxu0 0.0
  %141 = vmatpush1.msra.mxu0 0.0
  %142 = vmatprep.subr.mxu0 0.0
  %143 = vmatpush1.msra.mxu0 0.0
  %144 = vmatprep.subr.mxu0 0.0
  %145 = vmatpush1.msra.mxu0 0.0
  %146 = vmatprep.mubr.f32.mxu0 0.0
  %147 = vmatmul.mubr.f32.gmra.mrb[0].mxu0 %v50
  %v148 = vpop.f32.mrb[0].mxu0
  %v149 = vadd.f32 0.0, %v148
  %v150 = vpop.f32.mrb[0].mxu0
  %151 = vmatprep.mubr.f32.mxu0 0.0
  %152 = vmatmul.mubr.f32.gmra.mrb[0].mxu0 %v51
  %v153 = vpop.f32.mrb[0].mxu0
  %v154 = vadd.f32 0.0, %v153
  %v155 = vpop.f32.mrb[0].mxu0
  %156 = vmatprep.mubr.f32.mxu0 0.0
  %157 = vmatmul.mubr.f32.gmra.mrb[0].mxu0 %v52
  %v158 = vpop.f32.mrb[0].mxu0
  %v159 = vadd.f32 0.0, %v158
  %v160 = vpop.f32.mrb[0].mxu0
  %161 = vmatprep.mubr.f32.mxu0 0.0
  %162 = vmatmul.mubr.f32.gmra.mrb[0].mxu0 %v53
  %v163 = vpop.f32.mrb[0].mxu0
  %v164 = vadd.f32 0.0, %v163
  %v165 = vpop.f32.mrb[0].mxu0
  %166 = vmatprep.mubr.f32.mxu0 0.0
  %167 = vmatmul.mubr.f32.gmra.mrb[0].mxu0 %v54
  %v168 = vpop.f32.mrb[0].mxu0
  %v169 = vadd.f32 0.0, %v168
  %v170 = vpop.f32.mrb[0].mxu0
  %171 = vmatprep.mubr.f32.mxu0 0.0
  %172 = vmatmul.mubr.f32.gmra.mrb[0].mxu0 %v55
  %v173 = vpop.f32.mrb[0].mxu0
  %v174 = vadd.f32 0.0, %v173
  %v175 = vpop.f32.mrb[0].mxu0
  %176 = vmatprep.mubr.f32.mxu0 0.0
  %177 = vmatmul.mubr.f32.gmra.mrb[0].mxu0 %v56
  %v178 = vpop.f32.mrb[0].mxu0
  %v179 = vadd.f32 0.0, %v178
  %v180 = vpop.f32.mrb[0].mxu0
  %181 = vmatprep.mubr.f32.mxu0 0.0
  %182 = vmatmul.mubr.f32.gmra.mrb[0].mxu0 %v57
  %v183 = vpop.f32.mrb[0].mxu0
  %v184 = vadd.f32 0.0, %v183
  %v185 = vpop.f32.mrb[0].mxu0
  %186 = vmatprep.mubr.f32.mxu0 0.0
  %187 = vmatmul.mubr.f32.gmra.mrb[0].mxu0 %v58
  %v188 = vpop.f32.mrb[0].mxu0
  %v189 = vadd.f32 0.0, %v188
  %v190 = vpop.f32.mrb[0].mxu0
  %191 = vmatprep.mubr.f32.mxu0 0.0
  %192 = vmatmul.mubr.f32.gmra.mrb[0].mxu0 %v59
  %v193 = vpop.f32.mrb[0].mxu0
  %v194 = vadd.f32 0.0, %v193
  %v195 = vpop.f32.mrb[0].mxu0
  %196 = vmatprep.mubr.f32.mxu0 0.0
  %197 = vmatmul.mubr.f32.gmra.mrb[0].mxu0 %v60
  %v198 = vpop.f32.mrb[0].mxu0
  %v199 = vadd.f32 0.0, %v198
  %v200 = vpop.f32.mrb[0].mxu0
  %201 = vmatprep.mubr.f32.mxu0 0.0
  %202 = vmatmul.mubr.f32.gmra.mrb[0].mxu0 %v61
  %v203 = vpop.f32.mrb[0].mxu0
  %v204 = vadd.f32 0.0, %v203
  %v205 = vpop.f32.mrb[0].mxu0
  %206 = vmatprep.mubr.f32.mxu0 0.0
  %207 = vmatmul.mubr.f32.gmra.mrb[0].mxu0 %v62
  %v208 = vpop.f32.mrb[0].mxu0
  %v209 = vadd.f32 0.0, %v208
  %v210 = vpop.f32.mrb[0].mxu0
  %211 = vmatprep.mubr.f32.mxu0 0.0
  %212 = vmatmul.mubr.f32.gmra.mrb[0].mxu0 %v63
  %v213 = vpop.f32.mrb[0].mxu0
  %v214 = vadd.f32 0.0, %v213
  %v215 = vpop.f32.mrb[0].mxu0
  %216 = vmatprep.mubr.f32.mxu0 0.0
  %217 = vmatmul.mubr.f32.gmra.mrb[0].mxu0 %v64
  %v218 = vpop.f32.mrb[0].mxu0
  %v219 = vadd.f32 0.0, %v218
  %v220 = vpop.f32.mrb[0].mxu0
  %221 = vmatprep.mubr.f32.mxu0 0.0
  %222 = vmatmul.mubr.f32.gmra.mrb[0].mxu0 %v65
  %v223 = vpop.f32.mrb[0].mxu0
  %v224 = vadd.f32 0.0, %v223
  %v225 = vpop.f32.mrb[0].mxu0
  %226 = vdwg.mxu0
  %v227 = vadd.f32 %v34, %v149
  %v228 = vadd.f32 %v35, %v154
  %v229 = vadd.f32 %v36, %v159
  %v230 = vadd.f32 %v37, %v164
  %v231 = vadd.f32 %v38, %v169
  %v232 = vadd.f32 %v39, %v174
  %v233 = vadd.f32 %v40, %v179
  %v234 = vadd.f32 %v41, %v184
  %v235 = vadd.f32 %v42, %v189
  %v236 = vadd.f32 %v43, %v194
  %v237 = vadd.f32 %v44, %v199
  %v238 = vadd.f32 %v45, %v204
  %v239 = vadd.f32 %v46, %v209
  %v240 = vadd.f32 %v47, %v214
  %v241 = vadd.f32 %v48, %v219
  %v242 = vadd.f32 %v49, %v224
  %243 = vst [vmem:[#allocation2] sm:$0xff] %v227
  %244 = vst [vmem:[#allocation2 + $0x8] sm:$0xff] %v228
  %245 = vst [vmem:[#allocation2 + $0x10] sm:$0xff] %v229
  %246 = vst [vmem:[#allocation2 + $0x18] sm:$0xff] %v230
  %247 = vst [vmem:[#allocation2 + $0x20] sm:$0xff] %v231
  %248 = vst [vmem:[#allocation2 + $0x28] sm:$0xff] %v232
  %249 = vst [vmem:[#allocation2 + $0x30] sm:$0xff] %v233
  %250 = vst [vmem:[#allocation2 + $0x38] sm:$0xff] %v234
  %251 = vst [vmem:[#allocation2 + $0x40] sm:$0xff] %v235
  %252 = vst [vmem:[#allocation2 + $0x48] sm:$0xff] %v236
  %253 = vst [vmem:[#allocation2 + $0x50] sm:$0xff] %v237
  %254 = vst [vmem:[#allocation2 + $0x58] sm:$0xff] %v238
  %255 = vst [vmem:[#allocation2 + $0x60] sm:$0xff] %v239
  %256 = vst [vmem:[#allocation2 + $0x68] sm:$0xff] %v240
  %257 = vst [vmem:[#allocation2 + $0x70] sm:$0xff] %v241
  %258 = vst [vmem:[#allocation2 + $0x78] sm:$0xff] %v242
  // Predicated region
  $region18: #{gcn_forward.5} parent=0 // pred_check
    %p259 = pneg %p14
  $region19: #{gcn_forward.5} parent=0 // pred_check_branch
    %261 = sbr.rel (%p259) target = $region21
  $region20: #{gcn_forward.5} parent=0 // pred_region
    %v262 = vld [vmem:[#allocation2] sm:$0xff]
    %v263 = vld [vmem:[#allocation2 + $0x8] sm:$0xff]
    %v264 = vld [vmem:[#allocation2 + $0x10] sm:$0xff]
    %v265 = vld [vmem:[#allocation2 + $0x18] sm:$0xff]
    %v266 = vld [vmem:[#allocation2 + $0x20] sm:$0xff]
    %v267 = vld [vmem:[#allocation2 + $0x28] sm:$0xff]
    %v268 = vld [vmem:[#allocation2 + $0x30] sm:$0xff]
    %v269 = vld [vmem:[#allocation2 + $0x38] sm:$0xff]
    %v270 = vld [vmem:[#allocation2 + $0x40] sm:$0xff]
    %v271 = vld [vmem:[#allocation2 + $0x48] sm:$0xff]
    %v272 = vld [vmem:[#allocation2 + $0x50] sm:$0xff]
    %v273 = vld [vmem:[#allocation2 + $0x58] sm:$0xff]
    %v274 = vld [vmem:[#allocation2 + $0x60] sm:$0xff]
    %v275 = vld [vmem:[#allocation2 + $0x68] sm:$0xff]
    %v276 = vld [vmem:[#allocation2 + $0x70] sm:$0xff]
    %v277 = vld [vmem:[#allocation2 + $0x78] sm:$0xff]
    %v278 = vld [vmem:[%s2] sm:$0x1]
    %v280 = vlaneseq
    %v281 = vshrl.u32 %v280, 7
    %v282 = vsub.s32 0, %v281
    %v283 = vrot.slane %v278, %v282
    %v285 = vadd.f32 %v262, %v283
    %v286 = vadd.f32 %v263, %v283
    %v287 = vadd.f32 %v264, %v283
    %v288 = vadd.f32 %v265, %v283
    %v289 = vadd.f32 %v266, %v283
    %v290 = vadd.f32 %v267, %v283
    %v291 = vadd.f32 %v268, %v283
    %v292 = vadd.f32 %v269, %v283
    %v293 = vadd.f32 %v270, %v283
    %v294 = vadd.f32 %v271, %v283
    %v295 = vadd.f32 %v272, %v283
    %v296 = vadd.f32 %v273, %v283
    %v297 = vadd.f32 %v274, %v283
    %v298 = vadd.f32 %v275, %v283
    %v299 = vadd.f32 %v276, %v283
    %v300 = vadd.f32 %v277, %v283
    %301 = vst [vmem:[%s3] sm:$0xff] %v285
    %302 = vst [vmem:[%s3 + $0x8] sm:$0xff] %v286
    %303 = vst [vmem:[%s3 + $0x10] sm:$0xff] %v287
    %304 = vst [vmem:[%s3 + $0x18] sm:$0xff] %v288
    %305 = vst [vmem:[%s3 + $0x20] sm:$0xff] %v289
    %306 = vst [vmem:[%s3 + $0x28] sm:$0xff] %v290
    %307 = vst [vmem:[%s3 + $0x30] sm:$0xff] %v291
    %308 = vst [vmem:[%s3 + $0x38] sm:$0xff] %v292
    %309 = vst [vmem:[%s3 + $0x40] sm:$0xff] %v293
    %310 = vst [vmem:[%s3 + $0x48] sm:$0xff] %v294
    %311 = vst [vmem:[%s3 + $0x50] sm:$0xff] %v295
    %312 = vst [vmem:[%s3 + $0x58] sm:$0xff] %v296
    %313 = vst [vmem:[%s3 + $0x60] sm:$0xff] %v297
    %314 = vst [vmem:[%s3 + $0x68] sm:$0xff] %v298
    %315 = vst [vmem:[%s3 + $0x70] sm:$0xff] %v299
    %316 = vst [vmem:[%s3 + $0x78] sm:$0xff] %v300
  $region21: #{gcn_forward.5} parent=0 // pred_fallthru
    _
  // Predicated region
  $region22: #{gcn_forward.5} parent=0 // pred_check
    _
  $region23: #{gcn_forward.5} parent=0 // pred_check_branch
    %318 = sbr.rel (0) target = $region25
  $region24: #{gcn_forward.5} parent=0 // pred_region
    _
  $region25: #{gcn_forward.5} parent=0 // pred_fallthru
    _
  // Predicated region
  $region26: #{gcn_forward.5} parent=0 // pred_check
    _
  $region27: #{gcn_forward.5} parent=0 // pred_check_branch
    %320 = sbr.rel (0) target = $region29
  $region28: #{gcn_forward.5} parent=0 // pred_region
    _
  $region29: #{gcn_forward.5} parent=0 // pred_fallthru
    _

// kernel: gcn_forward.4
$region0: #{gcn_forward.4}
  #allocation0 [shape = 'u32[]', space=smem, size = 0x4, offset = 0x4, fixed_abs, tag = 'smem constant byte address 0x4 - core index']
  #allocation1 [shape = 'u32[144,128]{1,0:T(1,128)}', space=vmem, size = 0x12000, scoped, tag = 'internal scratch']
  #allocation2 [shape = 'f32[128,128]{1,0:T(8,128)}', space=vmem, size = 0x10000, scoped, tag = 'scratch operand']
  %s0 = inlined_call_operand.vmem [shape: f32[128,128], index: 0, kind: input, shape index: {}]
  %s1 = inlined_call_operand.vmem [shape: f32[128,128], index: 1, kind: input, shape index: {}]
  %s2 = inlined_call_operand.vmem [shape: f32[1,128], index: 2, kind: input, shape index: {}]
  %s3 = inlined_call_operand.vmem [shape: f32[128,128], index: 3, kind: input, shape index: {}]
  %s4 = inlined_call_operand.vmem [shape: f32[128,128], index: 4, kind: output, shape index: {}]
  %s5 = sld [smem:[#allocation0]]
  $region34: #{gcn_forward.4} parent=0
    _
  %s7 = ssub.s32 1, %s5
  %s8 = scalar_select 0, %s7, %s5
  // Predicated region
  $region2: #{gcn_forward.4} parent=0 // pred_check
    _
  $region3: #{gcn_forward.4} parent=0 // pred_check_branch
    %10 = sbr.rel (0) target = $region5
  $region4: #{gcn_forward.4} parent=0 // pred_region
    _
  $region5: #{gcn_forward.4} parent=0 // pred_fallthru
    _
  // Predicated region
  $region6: #{gcn_forward.4} parent=0 // pred_check
    _
  $region7: #{gcn_forward.4} parent=0 // pred_check_branch
    %12 = sbr.rel (0) target = $region9
  $region8: #{gcn_forward.4} parent=0 // pred_region
    _
  $region9: #{gcn_forward.4} parent=0 // pred_fallthru
    _
  // Predicated region
  $region10: #{gcn_forward.4} parent=0 // pred_check
    _
  $region11: #{gcn_forward.4} parent=0 // pred_check_branch
    %14 = sbr.rel (0) target = $region13
  $region12: #{gcn_forward.4} parent=0 // pred_region
    _
  $region13: #{gcn_forward.4} parent=0 // pred_fallthru
    _
  // Predicated region
  $region14: #{gcn_forward.4} parent=0 // pred_check
    _
  $region15: #{gcn_forward.4} parent=0 // pred_check_branch
    %16 = sbr.rel (0) target = $region17
  $region16: #{gcn_forward.4} parent=0 // pred_region
    _
  $region17: #{gcn_forward.4} parent=0 // pred_fallthru
    _
  %p17 = scmp.eq.s32.totalorder 0, 0
  // Predicated region
  $region18: #{gcn_forward.4} parent=0 // pred_check
    %p18 = pneg %p17
  $region19: #{gcn_forward.4} parent=0 // pred_check_branch
    %20 = sbr.rel (%p18) target = $region21
  $region20: #{gcn_forward.4} parent=0 // pred_region
    %21 = vst [vmem:[#allocation2] sm:$0xff] 0.0
    %22 = vst [vmem:[#allocation2 + $0x8] sm:$0xff] 0.0
    %23 = vst [vmem:[#allocation2 + $0x10] sm:$0xff] 0.0
    %24 = vst [vmem:[#allocation2 + $0x18] sm:$0xff] 0.0
    %25 = vst [vmem:[#allocation2 + $0x20] sm:$0xff] 0.0
    %26 = vst [vmem:[#allocation2 + $0x28] sm:$0xff] 0.0
    %27 = vst [vmem:[#allocation2 + $0x30] sm:$0xff] 0.0
    %28 = vst [vmem:[#allocation2 + $0x38] sm:$0xff] 0.0
    %29 = vst [vmem:[#allocation2 + $0x40] sm:$0xff] 0.0
    %30 = vst [vmem:[#allocation2 + $0x48] sm:$0xff] 0.0
    %31 = vst [vmem:[#allocation2 + $0x50] sm:$0xff] 0.0
    %32 = vst [vmem:[#allocation2 + $0x58] sm:$0xff] 0.0
    %33 = vst [vmem:[#allocation2 + $0x60] sm:$0xff] 0.0
    %34 = vst [vmem:[#allocation2 + $0x68] sm:$0xff] 0.0
    %35 = vst [vmem:[#allocation2 + $0x70] sm:$0xff] 0.0
    %36 = vst [vmem:[#allocation2 + $0x78] sm:$0xff] 0.0
  $region21: #{gcn_forward.4} parent=0 // pred_fallthru
    _
  %v37 = vld [vmem:[#allocation2] sm:$0xff]
  %v38 = vld [vmem:[#allocation2 + $0x8] sm:$0xff]
  %v39 = vld [vmem:[#allocation2 + $0x10] sm:$0xff]
  %v40 = vld [vmem:[#allocation2 + $0x18] sm:$0xff]
  %v41 = vld [vmem:[#allocation2 + $0x20] sm:$0xff]
  %v42 = vld [vmem:[#allocation2 + $0x28] sm:$0xff]
  %v43 = vld [vmem:[#allocation2 + $0x30] sm:$0xff]
  %v44 = vld [vmem:[#allocation2 + $0x38] sm:$0xff]
  %v45 = vld [vmem:[#allocation2 + $0x40] sm:$0xff]
  %v46 = vld [vmem:[#allocation2 + $0x48] sm:$0xff]
  %v47 = vld [vmem:[#allocation2 + $0x50] sm:$0xff]
  %v48 = vld [vmem:[#allocation2 + $0x58] sm:$0xff]
  %v49 = vld [vmem:[#allocation2 + $0x60] sm:$0xff]
  %v50 = vld [vmem:[#allocation2 + $0x68] sm:$0xff]
  %v51 = vld [vmem:[#allocation2 + $0x70] sm:$0xff]
  %v52 = vld [vmem:[#allocation2 + $0x78] sm:$0xff]
  %v53 = vld [vmem:[%s0] sm:$0xff]
  %v54 = vld [vmem:[%s0 + $0x8] sm:$0xff]
  %v55 = vld [vmem:[%s0 + $0x10] sm:$0xff]
  %v56 = vld [vmem:[%s0 + $0x18] sm:$0xff]
  %v57 = vld [vmem:[%s0 + $0x20] sm:$0xff]
  %v58 = vld [vmem:[%s0 + $0x28] sm:$0xff]
  %v59 = vld [vmem:[%s0 + $0x30] sm:$0xff]
  %v60 = vld [vmem:[%s0 + $0x38] sm:$0xff]
  %v61 = vld [vmem:[%s0 + $0x40] sm:$0xff]
  %v62 = vld [vmem:[%s0 + $0x48] sm:$0xff]
  %v63 = vld [vmem:[%s0 + $0x50] sm:$0xff]
  %v64 = vld [vmem:[%s0 + $0x58] sm:$0xff]
  %v65 = vld [vmem:[%s0 + $0x60] sm:$0xff]
  %v66 = vld [vmem:[%s0 + $0x68] sm:$0xff]
  %v67 = vld [vmem:[%s0 + $0x70] sm:$0xff]
  %v68 = vld [vmem:[%s0 + $0x78] sm:$0xff]
  %v69 = vld [vmem:[%s1] sm:$0xff]
  %v70 = vld [vmem:[%s1 + $0x8] sm:$0xff]
  %v71 = vld [vmem:[%s1 + $0x10] sm:$0xff]
  %v72 = vld [vmem:[%s1 + $0x18] sm:$0xff]
  %v73 = vld [vmem:[%s1 + $0x20] sm:$0xff]
  %v74 = vld [vmem:[%s1 + $0x28] sm:$0xff]
  %v75 = vld [vmem:[%s1 + $0x30] sm:$0xff]
  %v76 = vld [vmem:[%s1 + $0x38] sm:$0xff]
  %v77 = vld [vmem:[%s1 + $0x40] sm:$0xff]
  %v78 = vld [vmem:[%s1 + $0x48] sm:$0xff]
  %v79 = vld [vmem:[%s1 + $0x50] sm:$0xff]
  %v80 = vld [vmem:[%s1 + $0x58] sm:$0xff]
  %v81 = vld [vmem:[%s1 + $0x60] sm:$0xff]
  %v82 = vld [vmem:[%s1 + $0x68] sm:$0xff]
  %v83 = vld [vmem:[%s1 + $0x70] sm:$0xff]
  %v84 = vld [vmem:[%s1 + $0x78] sm:$0xff]
  %85 = vmatprep.subr.mxu0 0.0
  %86 = vmatpush1.msra.mxu0 %v69
  %87 = vmatprep.subr.mxu0 0.0
  %88 = vmatpush1.msra.mxu0 %v70
  %89 = vmatprep.subr.mxu0 0.0
  %90 = vmatpush1.msra.mxu0 %v71
  %91 = vmatprep.subr.mxu0 0.0
  %92 = vmatpush1.msra.mxu0 %v72
  %93 = vmatprep.subr.mxu0 0.0
  %94 = vmatpush1.msra.mxu0 %v73
  %95 = vmatprep.subr.mxu0 0.0
  %96 = vmatpush1.msra.mxu0 %v74
  %97 = vmatprep.subr.mxu0 0.0
  %98 = vmatpush1.msra.mxu0 %v75
  %99 = vmatprep.subr.mxu0 0.0
  %100 = vmatpush1.msra.mxu0 %v76
  %101 = vmatprep.subr.mxu0 0.0
  %102 = vmatpush1.msra.mxu0 %v77
  %103 = vmatprep.subr.mxu0 0.0
  %104 = vmatpush1.msra.mxu0 %v78
  %105 = vmatprep.subr.mxu0 0.0
  %106 = vmatpush1.msra.mxu0 %v79
  %107 = vmatprep.subr.mxu0 0.0
  %108 = vmatpush1.msra.mxu0 %v80
  %109 = vmatprep.subr.mxu0 0.0
  %110 = vmatpush1.msra.mxu0 %v81
  %111 = vmatprep.subr.mxu0 0.0
  %112 = vmatpush1.msra.mxu0 %v82
  %113 = vmatprep.subr.mxu0 0.0
  %114 = vmatpush1.msra.mxu0 %v83
  %115 = vmatprep.subr.mxu0 0.0
  %116 = vmatpush1.msra.mxu0 %v84
  %117 = vmatprep.subr.mxu0 0.0
  %118 = vmatpush1.msra.mxu0 0.0
  %119 = vmatprep.subr.mxu0 0.0
  %120 = vmatpush1.msra.mxu0 0.0
  %121 = vmatprep.subr.mxu0 0.0
  %122 = vmatpush1.msra.mxu0 0.0
  %123 = vmatprep.subr.mxu0 0.0
  %124 = vmatpush1.msra.mxu0 0.0
  %125 = vmatprep.subr.mxu0 0.0
  %126 = vmatpush1.msra.mxu0 0.0
  %127 = vmatprep.subr.mxu0 0.0
  %128 = vmatpush1.msra.mxu0 0.0
  %129 = vmatprep.subr.mxu0 0.0
  %130 = vmatpush1.msra.mxu0 0.0
  %131 = vmatprep.subr.mxu0 0.0
  %132 = vmatpush1.msra.mxu0 0.0
  %133 = vmatprep.subr.mxu0 0.0
  %134 = vmatpush1.msra.mxu0 0.0
  %135 = vmatprep.subr.mxu0 0.0
  %136 = vmatpush1.msra.mxu0 0.0
  %137 = vmatprep.subr.mxu0 0.0
  %138 = vmatpush1.msra.mxu0 0.0
  %139 = vmatprep.subr.mxu0 0.0
  %140 = vmatpush1.msra.mxu0 0.0
  %141 = vmatprep.subr.mxu0 0.0
  %142 = vmatpush1.msra.mxu0 0.0
  %143 = vmatprep.subr.mxu0 0.0
  %144 = vmatpush1.msra.mxu0 0.0
  %145 = vmatprep.subr.mxu0 0.0
  %146 = vmatpush1.msra.mxu0 0.0
  %147 = vmatprep.subr.mxu0 0.0
  %148 = vmatpush1.msra.mxu0 0.0
  %149 = vmatprep.mubr.f32.mxu0 0.0
  %150 = vmatmul.mubr.f32.gmra.mrb[0].mxu0 %v53
  %v151 = vpop.f32.mrb[0].mxu0
  %v152 = vadd.f32 0.0, %v151
  %v153 = vpop.f32.mrb[0].mxu0
  %154 = vmatprep.mubr.f32.mxu0 0.0
  %155 = vmatmul.mubr.f32.gmra.mrb[0].mxu0 %v54
  %v156 = vpop.f32.mrb[0].mxu0
  %v157 = vadd.f32 0.0, %v156
  %v158 = vpop.f32.mrb[0].mxu0
  %159 = vmatprep.mubr.f32.mxu0 0.0
  %160 = vmatmul.mubr.f32.gmra.mrb[0].mxu0 %v55
  %v161 = vpop.f32.mrb[0].mxu0
  %v162 = vadd.f32 0.0, %v161
  %v163 = vpop.f32.mrb[0].mxu0
  %164 = vmatprep.mubr.f32.mxu0 0.0
  %165 = vmatmul.mubr.f32.gmra.mrb[0].mxu0 %v56
  %v166 = vpop.f32.mrb[0].mxu0
  %v167 = vadd.f32 0.0, %v166
  %v168 = vpop.f32.mrb[0].mxu0
  %169 = vmatprep.mubr.f32.mxu0 0.0
  %170 = vmatmul.mubr.f32.gmra.mrb[0].mxu0 %v57
  %v171 = vpop.f32.mrb[0].mxu0
  %v172 = vadd.f32 0.0, %v171
  %v173 = vpop.f32.mrb[0].mxu0
  %174 = vmatprep.mubr.f32.mxu0 0.0
  %175 = vmatmul.mubr.f32.gmra.mrb[0].mxu0 %v58
  %v176 = vpop.f32.mrb[0].mxu0
  %v177 = vadd.f32 0.0, %v176
  %v178 = vpop.f32.mrb[0].mxu0
  %179 = vmatprep.mubr.f32.mxu0 0.0
  %180 = vmatmul.mubr.f32.gmra.mrb[0].mxu0 %v59
  %v181 = vpop.f32.mrb[0].mxu0
  %v182 = vadd.f32 0.0, %v181
  %v183 = vpop.f32.mrb[0].mxu0
  %184 = vmatprep.mubr.f32.mxu0 0.0
  %185 = vmatmul.mubr.f32.gmra.mrb[0].mxu0 %v60
  %v186 = vpop.f32.mrb[0].mxu0
  %v187 = vadd.f32 0.0, %v186
  %v188 = vpop.f32.mrb[0].mxu0
  %189 = vmatprep.mubr.f32.mxu0 0.0
  %190 = vmatmul.mubr.f32.gmra.mrb[0].mxu0 %v61
  %v191 = vpop.f32.mrb[0].mxu0
  %v192 = vadd.f32 0.0, %v191
  %v193 = vpop.f32.mrb[0].mxu0
  %194 = vmatprep.mubr.f32.mxu0 0.0
  %195 = vmatmul.mubr.f32.gmra.mrb[0].mxu0 %v62
  %v196 = vpop.f32.mrb[0].mxu0
  %v197 = vadd.f32 0.0, %v196
  %v198 = vpop.f32.mrb[0].mxu0
  %199 = vmatprep.mubr.f32.mxu0 0.0
  %200 = vmatmul.mubr.f32.gmra.mrb[0].mxu0 %v63
  %v201 = vpop.f32.mrb[0].mxu0
  %v202 = vadd.f32 0.0, %v201
  %v203 = vpop.f32.mrb[0].mxu0
  %204 = vmatprep.mubr.f32.mxu0 0.0
  %205 = vmatmul.mubr.f32.gmra.mrb[0].mxu0 %v64
  %v206 = vpop.f32.mrb[0].mxu0
  %v207 = vadd.f32 0.0, %v206
  %v208 = vpop.f32.mrb[0].mxu0
  %209 = vmatprep.mubr.f32.mxu0 0.0
  %210 = vmatmul.mubr.f32.gmra.mrb[0].mxu0 %v65
  %v211 = vpop.f32.mrb[0].mxu0
  %v212 = vadd.f32 0.0, %v211
  %v213 = vpop.f32.mrb[0].mxu0
  %214 = vmatprep.mubr.f32.mxu0 0.0
  %215 = vmatmul.mubr.f32.gmra.mrb[0].mxu0 %v66
  %v216 = vpop.f32.mrb[0].mxu0
  %v217 = vadd.f32 0.0, %v216
  %v218 = vpop.f32.mrb[0].mxu0
  %219 = vmatprep.mubr.f32.mxu0 0.0
  %220 = vmatmul.mubr.f32.gmra.mrb[0].mxu0 %v67
  %v221 = vpop.f32.mrb[0].mxu0
  %v222 = vadd.f32 0.0, %v221
  %v223 = vpop.f32.mrb[0].mxu0
  %224 = vmatprep.mubr.f32.mxu0 0.0
  %225 = vmatmul.mubr.f32.gmra.mrb[0].mxu0 %v68
  %v226 = vpop.f32.mrb[0].mxu0
  %v227 = vadd.f32 0.0, %v226
  %v228 = vpop.f32.mrb[0].mxu0
  %229 = vdwg.mxu0
  %v230 = vadd.f32 %v37, %v152
  %v231 = vadd.f32 %v38, %v157
  %v232 = vadd.f32 %v39, %v162
  %v233 = vadd.f32 %v40, %v167
  %v234 = vadd.f32 %v41, %v172
  %v235 = vadd.f32 %v42, %v177
  %v236 = vadd.f32 %v43, %v182
  %v237 = vadd.f32 %v44, %v187
  %v238 = vadd.f32 %v45, %v192
  %v239 = vadd.f32 %v46, %v197
  %v240 = vadd.f32 %v47, %v202
  %v241 = vadd.f32 %v48, %v207
  %v242 = vadd.f32 %v49, %v212
  %v243 = vadd.f32 %v50, %v217
  %v244 = vadd.f32 %v51, %v222
  %v245 = vadd.f32 %v52, %v227
  %246 = vst [vmem:[#allocation2] sm:$0xff] %v230
  %247 = vst [vmem:[#allocation2 + $0x8] sm:$0xff] %v231
  %248 = vst [vmem:[#allocation2 + $0x10] sm:$0xff] %v232
  %249 = vst [vmem:[#allocation2 + $0x18] sm:$0xff] %v233
  %250 = vst [vmem:[#allocation2 + $0x20] sm:$0xff] %v234
  %251 = vst [vmem:[#allocation2 + $0x28] sm:$0xff] %v235
  %252 = vst [vmem:[#allocation2 + $0x30] sm:$0xff] %v236
  %253 = vst [vmem:[#allocation2 + $0x38] sm:$0xff] %v237
  %254 = vst [vmem:[#allocation2 + $0x40] sm:$0xff] %v238
  %255 = vst [vmem:[#allocation2 + $0x48] sm:$0xff] %v239
  %256 = vst [vmem:[#allocation2 + $0x50] sm:$0xff] %v240
  %257 = vst [vmem:[#allocation2 + $0x58] sm:$0xff] %v241
  %258 = vst [vmem:[#allocation2 + $0x60] sm:$0xff] %v242
  %259 = vst [vmem:[#allocation2 + $0x68] sm:$0xff] %v243
  %260 = vst [vmem:[#allocation2 + $0x70] sm:$0xff] %v244
  %261 = vst [vmem:[#allocation2 + $0x78] sm:$0xff] %v245
  // Predicated region
  $region22: #{gcn_forward.4} parent=0 // pred_check
    %p262 = pneg %p17
  $region23: #{gcn_forward.4} parent=0 // pred_check_branch
    %264 = sbr.rel (%p262) target = $region25
  $region24: #{gcn_forward.4} parent=0 // pred_region
    %v265 = vld [vmem:[#allocation2] sm:$0xff]
    %v266 = vld [vmem:[#allocation2 + $0x8] sm:$0xff]
    %v267 = vld [vmem:[#allocation2 + $0x10] sm:$0xff]
    %v268 = vld [vmem:[#allocation2 + $0x18] sm:$0xff]
    %v269 = vld [vmem:[#allocation2 + $0x20] sm:$0xff]
    %v270 = vld [vmem:[#allocation2 + $0x28] sm:$0xff]
    %v271 = vld [vmem:[#allocation2 + $0x30] sm:$0xff]
    %v272 = vld [vmem:[#allocation2 + $0x38] sm:$0xff]
    %v273 = vld [vmem:[#allocation2 + $0x40] sm:$0xff]
    %v274 = vld [vmem:[#allocation2 + $0x48] sm:$0xff]
    %v275 = vld [vmem:[#allocation2 + $0x50] sm:$0xff]
    %v276 = vld [vmem:[#allocation2 + $0x58] sm:$0xff]
    %v277 = vld [vmem:[#allocation2 + $0x60] sm:$0xff]
    %v278 = vld [vmem:[#allocation2 + $0x68] sm:$0xff]
    %v279 = vld [vmem:[#allocation2 + $0x70] sm:$0xff]
    %v280 = vld [vmem:[#allocation2 + $0x78] sm:$0xff]
    %v281 = vld [vmem:[%s2] sm:$0x1]
    %v283 = vlaneseq
    %v284 = vshrl.u32 %v283, 7
    %v285 = vsub.s32 0, %v284
    %v286 = vrot.slane %v281, %v285
    %v288 = vadd.f32 %v265, %v286
    %v289 = vadd.f32 %v266, %v286
    %v290 = vadd.f32 %v267, %v286
    %v291 = vadd.f32 %v268, %v286
    %v292 = vadd.f32 %v269, %v286
    %v293 = vadd.f32 %v270, %v286
    %v294 = vadd.f32 %v271, %v286
    %v295 = vadd.f32 %v272, %v286
    %v296 = vadd.f32 %v273, %v286
    %v297 = vadd.f32 %v274, %v286
    %v298 = vadd.f32 %v275, %v286
    %v299 = vadd.f32 %v276, %v286
    %v300 = vadd.f32 %v277, %v286
    %v301 = vadd.f32 %v278, %v286
    %v302 = vadd.f32 %v279, %v286
    %v303 = vadd.f32 %v280, %v286
    %v304 = vmax.f32 %v288, 0.0
    %v305 = vmax.f32 %v289, 0.0
    %v306 = vmax.f32 %v290, 0.0
    %v307 = vmax.f32 %v291, 0.0
    %v308 = vmax.f32 %v292, 0.0
    %v309 = vmax.f32 %v293, 0.0
    %v310 = vmax.f32 %v294, 0.0
    %v311 = vmax.f32 %v295, 0.0
    %v312 = vmax.f32 %v296, 0.0
    %v313 = vmax.f32 %v297, 0.0
    %v314 = vmax.f32 %v298, 0.0
    %v315 = vmax.f32 %v299, 0.0
    %v316 = vmax.f32 %v300, 0.0
    %v317 = vmax.f32 %v301, 0.0
    %v318 = vmax.f32 %v302, 0.0
    %v319 = vmax.f32 %v303, 0.0
    %v320 = vld [vmem:[%s3] sm:$0xff]
    %v321 = vld [vmem:[%s3 + $0x8] sm:$0xff]
    %v322 = vld [vmem:[%s3 + $0x10] sm:$0xff]
    %v323 = vld [vmem:[%s3 + $0x18] sm:$0xff]
    %v324 = vld [vmem:[%s3 + $0x20] sm:$0xff]
    %v325 = vld [vmem:[%s3 + $0x28] sm:$0xff]
    %v326 = vld [vmem:[%s3 + $0x30] sm:$0xff]
    %v327 = vld [vmem:[%s3 + $0x38] sm:$0xff]
    %v328 = vld [vmem:[%s3 + $0x40] sm:$0xff]
    %v329 = vld [vmem:[%s3 + $0x48] sm:$0xff]
    %v330 = vld [vmem:[%s3 + $0x50] sm:$0xff]
    %v331 = vld [vmem:[%s3 + $0x58] sm:$0xff]
    %v332 = vld [vmem:[%s3 + $0x60] sm:$0xff]
    %v333 = vld [vmem:[%s3 + $0x68] sm:$0xff]
    %v334 = vld [vmem:[%s3 + $0x70] sm:$0xff]
    %v335 = vld [vmem:[%s3 + $0x78] sm:$0xff]
    %336 = vmatprep.subr.mxu0 0.0
    %337 = vmatpush1.msra.mxu0 %v320
    %338 = vmatprep.subr.mxu0 0.0
    %339 = vmatpush1.msra.mxu0 %v321
    %340 = vmatprep.subr.mxu0 0.0
    %341 = vmatpush1.msra.mxu0 %v322
    %342 = vmatprep.subr.mxu0 0.0
    %343 = vmatpush1.msra.mxu0 %v323
    %344 = vmatprep.subr.mxu0 0.0
    %345 = vmatpush1.msra.mxu0 %v324
    %346 = vmatprep.subr.mxu0 0.0
    %347 = vmatpush1.msra.mxu0 %v325
    %348 = vmatprep.subr.mxu0 0.0
    %349 = vmatpush1.msra.mxu0 %v326
    %350 = vmatprep.subr.mxu0 0.0
    %351 = vmatpush1.msra.mxu0 %v327
    %352 = vmatprep.subr.mxu0 0.0
    %353 = vmatpush1.msra.mxu0 %v328
    %354 = vmatprep.subr.mxu0 0.0
    %355 = vmatpush1.msra.mxu0 %v329
    %356 = vmatprep.subr.mxu0 0.0
    %357 = vmatpush1.msra.mxu0 %v330
    %358 = vmatprep.subr.mxu0 0.0
    %359 = vmatpush1.msra.mxu0 %v331
    %360 = vmatprep.subr.mxu0 0.0
    %361 = vmatpush1.msra.mxu0 %v332
    %362 = vmatprep.subr.mxu0 0.0
    %363 = vmatpush1.msra.mxu0 %v333
    %364 = vmatprep.subr.mxu0 0.0
    %365 = vmatpush1.msra.mxu0 %v334
    %366 = vmatprep.subr.mxu0 0.0
    %367 = vmatpush1.msra.mxu0 %v335
    %368 = vmatprep.subr.mxu0 0.0
    %369 = vmatpush1.msra.mxu0 0.0
    %370 = vmatprep.subr.mxu0 0.0
    %371 = vmatpush1.msra.mxu0 0.0
    %372 = vmatprep.subr.mxu0 0.0
    %373 = vmatpush1.msra.mxu0 0.0
    %374 = vmatprep.subr.mxu0 0.0
    %375 = vmatpush1.msra.mxu0 0.0
    %376 = vmatprep.subr.mxu0 0.0
    %377 = vmatpush1.msra.mxu0 0.0
    %378 = vmatprep.subr.mxu0 0.0
    %379 = vmatpush1.msra.mxu0 0.0
    %380 = vmatprep.subr.mxu0 0.0
    %381 = vmatpush1.msra.mxu0 0.0
    %382 = vmatprep.subr.mxu0 0.0
    %383 = vmatpush1.msra.mxu0 0.0
    %384 = vmatprep.subr.mxu0 0.0
    %385 = vmatpush1.msra.mxu0 0.0
    %386 = vmatprep.subr.mxu0 0.0
    %387 = vmatpush1.msra.mxu0 0.0
    %388 = vmatprep.subr.mxu0 0.0
    %389 = vmatpush1.msra.mxu0 0.0
    %390 = vmatprep.subr.mxu0 0.0
    %391 = vmatpush1.msra.mxu0 0.0
    %392 = vmatprep.subr.mxu0 0.0
    %393 = vmatpush1.msra.mxu0 0.0
    %394 = vmatprep.subr.mxu0 0.0
    %395 = vmatpush1.msra.mxu0 0.0
    %396 = vmatprep.subr.mxu0 0.0
    %397 = vmatpush1.msra.mxu0 0.0
    %398 = vmatprep.subr.mxu0 0.0
    %399 = vmatpush1.msra.mxu0 0.0
    %400 = vmatprep.mubr.f32.mxu0 0.0
    %401 = vmatmul.mubr.f32.gmra.mrb[0].mxu0 %v304
    %v402 = vpop.f32.mrb[0].mxu0
    %v403 = vadd.f32 0.0, %v402
    %v404 = vpop.f32.mrb[0].mxu0
    %405 = vmatprep.mubr.f32.mxu0 0.0
    %406 = vmatmul.mubr.f32.gmra.mrb[0].mxu0 %v305
    %v407 = vpop.f32.mrb[0].mxu0
    %v408 = vadd.f32 0.0, %v407
    %v409 = vpop.f32.mrb[0].mxu0
    %410 = vmatprep.mubr.f32.mxu0 0.0
    %411 = vmatmul.mubr.f32.gmra.mrb[0].mxu0 %v306
    %v412 = vpop.f32.mrb[0].mxu0
    %v413 = vadd.f32 0.0, %v412
    %v414 = vpop.f32.mrb[0].mxu0
    %415 = vmatprep.mubr.f32.mxu0 0.0
    %416 = vmatmul.mubr.f32.gmra.mrb[0].mxu0 %v307
    %v417 = vpop.f32.mrb[0].mxu0
    %v418 = vadd.f32 0.0, %v417
    %v419 = vpop.f32.mrb[0].mxu0
    %420 = vmatprep.mubr.f32.mxu0 0.0
    %421 = vmatmul.mubr.f32.gmra.mrb[0].mxu0 %v308
    %v422 = vpop.f32.mrb[0].mxu0
    %v423 = vadd.f32 0.0, %v422
    %v424 = vpop.f32.mrb[0].mxu0
    %425 = vmatprep.mubr.f32.mxu0 0.0
    %426 = vmatmul.mubr.f32.gmra.mrb[0].mxu0 %v309
    %v427 = vpop.f32.mrb[0].mxu0
    %v428 = vadd.f32 0.0, %v427
    %v429 = vpop.f32.mrb[0].mxu0
    %430 = vmatprep.mubr.f32.mxu0 0.0
    %431 = vmatmul.mubr.f32.gmra.mrb[0].mxu0 %v310
    %v432 = vpop.f32.mrb[0].mxu0
    %v433 = vadd.f32 0.0, %v432
    %v434 = vpop.f32.mrb[0].mxu0
    %435 = vmatprep.mubr.f32.mxu0 0.0
    %436 = vmatmul.mubr.f32.gmra.mrb[0].mxu0 %v311
    %v437 = vpop.f32.mrb[0].mxu0
    %v438 = vadd.f32 0.0, %v437
    %v439 = vpop.f32.mrb[0].mxu0
    %440 = vmatprep.mubr.f32.mxu0 0.0
    %441 = vmatmul.mubr.f32.gmra.mrb[0].mxu0 %v312
    %v442 = vpop.f32.mrb[0].mxu0
    %v443 = vadd.f32 0.0, %v442
    %v444 = vpop.f32.mrb[0].mxu0
    %445 = vmatprep.mubr.f32.mxu0 0.0
    %446 = vmatmul.mubr.f32.gmra.mrb[0].mxu0 %v313
    %v447 = vpop.f32.mrb[0].mxu0
    %v448 = vadd.f32 0.0, %v447
    %v449 = vpop.f32.mrb[0].mxu0
    %450 = vmatprep.mubr.f32.mxu0 0.0
    %451 = vmatmul.mubr.f32.gmra.mrb[0].mxu0 %v314
    %v452 = vpop.f32.mrb[0].mxu0
    %v453 = vadd.f32 0.0, %v452
    %v454 = vpop.f32.mrb[0].mxu0
    %455 = vmatprep.mubr.f32.mxu0 0.0
    %456 = vmatmul.mubr.f32.gmra.mrb[0].mxu0 %v315
    %v457 = vpop.f32.mrb[0].mxu0
    %v458 = vadd.f32 0.0, %v457
    %v459 = vpop.f32.mrb[0].mxu0
    %460 = vmatprep.mubr.f32.mxu0 0.0
    %461 = vmatmul.mubr.f32.gmra.mrb[0].mxu0 %v316
    %v462 = vpop.f32.mrb[0].mxu0
    %v463 = vadd.f32 0.0, %v462
    %v464 = vpop.f32.mrb[0].mxu0
    %465 = vmatprep.mubr.f32.mxu0 0.0
    %466 = vmatmul.mubr.f32.gmra.mrb[0].mxu0 %v317
    %v467 = vpop.f32.mrb[0].mxu0
    %v468 = vadd.f32 0.0, %v467
    %v469 = vpop.f32.mrb[0].mxu0
    %470 = vmatprep.mubr.f32.mxu0 0.0
    %471 = vmatmul.mubr.f32.gmra.mrb[0].mxu0 %v318
    %v472 = vpop.f32.mrb[0].mxu0
    %v473 = vadd.f32 0.0, %v472
    %v474 = vpop.f32.mrb[0].mxu0
    %475 = vmatprep.mubr.f32.mxu0 0.0
    %476 = vmatmul.mubr.f32.gmra.mrb[0].mxu0 %v319
    %v477 = vpop.f32.mrb[0].mxu0
    %v478 = vadd.f32 0.0, %v477
    %v479 = vpop.f32.mrb[0].mxu0
    %480 = vdwg.mxu0
    %481 = vst [vmem:[%s4] sm:$0xff] %v403
    %482 = vst [vmem:[%s4 + $0x8] sm:$0xff] %v408
    %483 = vst [vmem:[%s4 + $0x10] sm:$0xff] %v413
    %484 = vst [vmem:[%s4 + $0x18] sm:$0xff] %v418
    %485 = vst [vmem:[%s4 + $0x20] sm:$0xff] %v423
    %486 = vst [vmem:[%s4 + $0x28] sm:$0xff] %v428
    %487 = vst [vmem:[%s4 + $0x30] sm:$0xff] %v433
    %488 = vst [vmem:[%s4 + $0x38] sm:$0xff] %v438
    %489 = vst [vmem:[%s4 + $0x40] sm:$0xff] %v443
    %490 = vst [vmem:[%s4 + $0x48] sm:$0xff] %v448
    %491 = vst [vmem:[%s4 + $0x50] sm:$0xff] %v453
    %492 = vst [vmem:[%s4 + $0x58] sm:$0xff] %v458
    %493 = vst [vmem:[%s4 + $0x60] sm:$0xff] %v463
    %494 = vst [vmem:[%s4 + $0x68] sm:$0xff] %v468
    %495 = vst [vmem:[%s4 + $0x70] sm:$0xff] %v473
    %496 = vst [vmem:[%s4 + $0x78] sm:$0xff] %v478
  $region25: #{gcn_forward.4} parent=0 // pred_fallthru
    _
  // Predicated region
  $region26: #{gcn_forward.4} parent=0 // pred_check
    _
  $region27: #{gcn_forward.4} parent=0 // pred_check_branch
    %498 = sbr.rel (0) target = $region29
  $region28: #{gcn_forward.4} parent=0 // pred_region
    _
  $region29: #{gcn_forward.4} parent=0 // pred_fallthru
    _
  // Predicated region
  $region30: #{gcn_forward.4} parent=0 // pred_check
    _
  $region31: #{gcn_forward.4} parent=0 // pred_check_branch
    %500 = sbr.rel (0) target = $region33
  $region32: #{gcn_forward.4} parent=0 // pred_region
    _
  $region33: #{gcn_forward.4} parent=0 // pred_fallthru
    _

</llo_original>
